<compile_context>
chip_gen: v7x
topology: tpu7x:2x2x1
jax: 0.10.0
libtpu: 0.0.40
codegen_flags: <defaults>
</compile_context>

<pallas_src>
import jax
import jax.numpy as jnp
from jax.experimental import pallas as pl
from jax.experimental.pallas import tpu as pltpu


def lstm_gen_kernel(x_ref, wih_ref, whh_ref, b_ref, wout_ref, bout_ref,
                    o_ref, xg_scr, hall_scr):
    """x_ref:(S,E)  wih_ref:(E,4H)  whh_ref:(H,4H)  b_ref:(1,4H)
       wout_ref:(H,Vp)  bout_ref:(1,Vp)  o_ref:(S,Vp)
       xg_scr:(S,4H)  hall_scr:(S,H)"""
    seq, H = hall_scr.shape

    # Fused input-to-hidden precompute for all 4 gates of all timesteps:
    # one MXU push + one broadcast bias add, lane-dense (S, 4H) result.
    xg_scr[...] = (jnp.dot(x_ref[...], wih_ref[...],
                           preferred_element_type=jnp.float32)
                   + b_ref[...])

    # Hoist the fused recurrent weight into vregs once for the whole time loop.
    whh = whh_ref[...]

    def step(t, carry):
        h, c = carry  # (1, H) values carried in vregs (no per-step VMEM h/c traffic)
        # Single (1,H)@(H,4H) recurrent matmul for all four gates.
        gates = xg_scr[pl.ds(t, 1), :] + jnp.dot(
            h, whh, preferred_element_type=jnp.float32)      # (1, 4H)
        i_t = jax.nn.sigmoid(gates[:, 0 * H:1 * H])
        f_t = jax.nn.sigmoid(gates[:, 1 * H:2 * H])
        g_t = jnp.tanh(gates[:, 2 * H:3 * H])
        o_t = jax.nn.sigmoid(gates[:, 3 * H:4 * H])
        c_t = f_t * c + i_t * g_t
        h_t = o_t * jnp.tanh(c_t)
        hall_scr[pl.ds(t, 1), :] = h_t
        return h_t, c_t

    # nn.LSTM default: zero initial hidden / cell state (forward() never feeds
    # self.hidden back into the LSTM call).
    carry = (jnp.zeros((1, H), jnp.float32), jnp.zeros((1, H), jnp.float32))
    if seq <= 64:
        # seq is static: fully unroll at trace time so the LLO scheduler sees
        # the whole serial chain.
        for t in range(seq):
            carry = step(t, carry)
    else:
        jax.lax.fori_loop(0, seq, step, carry, unroll=8)

    # hidden2output + log_softmax over the (lane-padded) vocab axis.
    # Padded lanes carry a -1e30 bias: they never win the max and exp() of them
    # underflows to 0, so valid lanes are exact.
    logits = (jnp.dot(hall_scr[...], wout_ref[...],
                      preferred_element_type=jnp.float32)
              + bout_ref[...])
    m = jnp.max(logits, axis=-1, keepdims=True)
    z = logits - m
    lse = jnp.log(jnp.sum(jnp.exp(z), axis=-1, keepdims=True))
    o_ref[...] = z - lse


def lstm_generator_forward(sentence, params):
    emb_table = params["emb"]     # (V, E)
    wih = params["wih"]           # (E, 4H)   fused gate order i,f,g,o
    whh = params["whh"]           # (H, 4H)
    b = params["b"]               # (1, 4H)   bias_ih + bias_hh
    wout = params["wout"]         # (H, V)
    bout = params["bout"]         # (1, V)

    seq = sentence.shape[0]
    V, E = emb_table.shape
    H = whh.shape[0]
    G = 4 * H

    # Lane-pad the vocab axis to a multiple of 128 so the projection,
    # log_softmax and the output store are full-vreg / unmasked.
    LANE = 128
    Vp = ((V + LANE - 1) // LANE) * LANE
    pad = Vp - V
    wout_p = jnp.pad(wout, ((0, 0), (0, pad)))                             # zero columns
    bout_p = jnp.pad(bout, ((0, 0), (0, pad)), constant_values=-1e30)      # "-inf" logits

    # Embedding lookup (glue: pure gather).
    embeds = jnp.take(emb_table, sentence, axis=0).astype(jnp.float32)     # (seq, E)

    out_p = pl.pallas_call(
        lstm_gen_kernel,
        out_shape=jax.ShapeDtypeStruct((seq, Vp), jnp.float32),
        grid_spec=pltpu.PrefetchScalarGridSpec(
            num_scalar_prefetch=0,
            grid=(1,),
            in_specs=[
                pl.BlockSpec((seq, E), lambda i: (0, 0)),
                pl.BlockSpec((E, G), lambda i: (0, 0)),
                pl.BlockSpec((H, G), lambda i: (0, 0)),
                pl.BlockSpec((1, G), lambda i: (0, 0)),
                pl.BlockSpec((H, Vp), lambda i: (0, 0)),
                pl.BlockSpec((1, Vp), lambda i: (0, 0)),
            ],
            out_specs=pl.BlockSpec((seq, Vp), lambda i: (0, 0)),
            scratch_shapes=[
                pltpu.VMEM((seq, G), jnp.float32),   # fused x-gate precompute
                pltpu.VMEM((seq, H), jnp.float32),   # all hidden states
            ],
        ),
        compiler_params=pltpu.CompilerParams(dimension_semantics=("arbitrary",)),
    )(embeds, wih, whh, b, wout_p, bout_p)

    return out_p[:, :V]


def reference_forward(sentence, params):
    """Pure-JAX reference matching torch nn.LSTM / nn.Linear / log_softmax semantics."""
    embeds = jnp.take(params["emb"], sentence, axis=0).astype(jnp.float32)
    H = params["whh"].shape[0]

    def step(carry, x):
        h, c = carry
        gates = x @ params["wih"] + params["b"][0] + h @ params["whh"]   # (4H,)
        i = jax.nn.sigmoid(gates[0:H])
        f = jax.nn.sigmoid(gates[H:2 * H])
        g = jnp.tanh(gates[2 * H:3 * H])
        o = jax.nn.sigmoid(gates[3 * H:4 * H])
        c = f * c + i * g
        h = o * jnp.tanh(c)
        return (h, c), h

    (_, _), hs = jax.lax.scan(step, (jnp.zeros(H), jnp.zeros(H)), embeds)
    logits = hs @ params["wout"] + params["bout"][0]
    return jax.nn.log_softmax(logits, axis=-1)


def make_params(key, vocab_size, embedding_size, hidden_size):
    """Deterministic synthetic parameters in PyTorch's (i, f, g, o) gate layout,
    pre-transposed / fused for the kernel."""
    ks = jax.random.split(key, 7)
    V, E, H = vocab_size, embedding_size, hidden_size
    s = 1.0 / jnp.sqrt(H)
    emb = jax.random.normal(ks[0], (V, E), jnp.float32)
    w_ih = jax.random.uniform(ks[1], (4 * H, E), jnp.float32, -s, s)   # torch weight_ih_l0
    w_hh = jax.random.uniform(ks[2], (4 * H, H), jnp.float32, -s, s)   # torch weight_hh_l0
    b_ih = jax.random.uniform(ks[3], (4 * H,), jnp.float32, -s, s)
    b_hh = jax.random.uniform(ks[4], (4 * H,), jnp.float32, -s, s)
    w_out = jax.random.uniform(ks[5], (V, H), jnp.float32, -s, s)      # torch Linear weight
    b_out = jax.random.uniform(ks[6], (V,), jnp.float32, -s, s)
    return {
        "emb": emb,
        "wih": w_ih.T,                          # (E, 4H)  fused i|f|g|o
        "whh": w_hh.T,                          # (H, 4H)
        "b": (b_ih + b_hh).reshape(1, 4 * H),   # (1, 4H)
        "wout": w_out.T,                        # (H, V)
        "bout": b_out.reshape(1, V),            # (1, V)
    }


if __name__ == "__main__":
    vocab_size, embedding_size, hidden_size, seq_len = 32, 16, 32, 8
    key = jax.random.PRNGKey(0)
    k_param, k_sent = jax.random.split(key)

    params = make_params(k_param, vocab_size, embedding_size, hidden_size)
    sentence = jax.random.randint(k_sent, (seq_len,), 0, vocab_size, dtype=jnp.int32)

    out = lstm_generator_forward(sentence, params)
    out = jax.block_until_ready(out)

    ref = reference_forward(sentence, params)
    assert out.shape == (seq_len, vocab_size)
    assert jnp.allclose(out, ref, atol=1e-5, rtol=1e-5), "mismatch vs pure-JAX reference"

    print("KERNEL_OK")
</pallas_src>

<mosaic_0001>
module attributes {stable_mosaic.version = 11 : i64} {
  func.func @lstm_gen_kernel(%arg0: i32, %arg1: memref<8x16xf32, #tpu.memory_space<vmem>>, %arg2: memref<16x128xf32, #tpu.memory_space<vmem>>, %arg3: memref<32x128xf32, #tpu.memory_space<vmem>>, %arg4: memref<1x128xf32, #tpu.memory_space<vmem>>, %arg5: memref<32x128xf32, #tpu.memory_space<vmem>>, %arg6: memref<1x128xf32, #tpu.memory_space<vmem>>, %arg7: memref<8x128xf32, #tpu.memory_space<vmem>>, %arg8: memref<8x128xf32, #tpu.memory_space<vmem>>, %arg9: memref<8x32xf32, #tpu.memory_space<vmem>>) attributes {dimension_semantics = [#tpu.dimension_semantics<arbitrary>], iteration_bounds = array<i64: 1>, scalar_prefetch = 0 : i64, scratch_operands = 2 : i64, tpu.core_type = #tpu.core_type<tc>, window_params = [{pipeline_mode = #tpu.pipeline_mode<synchronous>, transform_indices = @transform_0, window_bounds = array<i64: 8, 16>}, {pipeline_mode = #tpu.pipeline_mode<synchronous>, transform_indices = @transform_1, window_bounds = array<i64: 16, 128>}, {pipeline_mode = #tpu.pipeline_mode<synchronous>, transform_indices = @transform_2, window_bounds = array<i64: 32, 128>}, {pipeline_mode = #tpu.pipeline_mode<synchronous>, transform_indices = @transform_3, window_bounds = array<i64: 1, 128>}, {pipeline_mode = #tpu.pipeline_mode<synchronous>, transform_indices = @transform_4, window_bounds = array<i64: 32, 128>}, {pipeline_mode = #tpu.pipeline_mode<synchronous>, transform_indices = @transform_5, window_bounds = array<i64: 1, 128>}, {pipeline_mode = #tpu.pipeline_mode<synchronous>, transform_indices = @transform_6, window_bounds = array<i64: 8, 128>}]} {
    %c0 = arith.constant 0 : index
    %c0_0 = arith.constant 0 : index
    %0 = vector.load %arg1[%c0, %c0_0] : memref<8x16xf32, #tpu.memory_space<vmem>>, vector<8x16xf32>
    %c0_1 = arith.constant 0 : index
    %c0_2 = arith.constant 0 : index
    %1 = vector.load %arg2[%c0_1, %c0_2] : memref<16x128xf32, #tpu.memory_space<vmem>>, vector<16x128xf32>
    %cst = arith.constant dense<0.000000e+00> : vector<8x128xf32>
    %2 = tpu.matmul %0, %1, %cst {dimension_numbers = #tpu.dot_dimension_numbers<[1], [0], [0], [1], [0, 0, 1, 1], [], []>} : vector<8x16xf32>, vector<16x128xf32>, vector<8x128xf32> -> vector<8x128xf32>
    %c0_3 = arith.constant 0 : index
    %c0_4 = arith.constant 0 : index
    %3 = vector.load %arg4[%c0_3, %c0_4] : memref<1x128xf32, #tpu.memory_space<vmem>>, vector<1x128xf32>
    %4 = vector.broadcast %3 : vector<1x128xf32> to vector<8x128xf32>
    %5 = arith.addf %2, %4 : vector<8x128xf32>
    %c0_5 = arith.constant 0 : index
    %c0_6 = arith.constant 0 : index
    %6 = vector.load %arg8[%c0_5, %c0_6] : memref<8x128xf32, #tpu.memory_space<vmem>>, vector<8x128xf32>
    tpu.vector_store %arg8[%c0_5, %c0_6], %5 {strides = array<i32>} : memref<8x128xf32, #tpu.memory_space<vmem>>, vector<8x128xf32>,
    %c0_7 = arith.constant 0 : index
    %c0_8 = arith.constant 0 : index
    %7 = vector.load %arg3[%c0_7, %c0_8] : memref<32x128xf32, #tpu.memory_space<vmem>>, vector<32x128xf32>
    %cst_9 = arith.constant 0.000000e+00 : f32
    %8 = vector.broadcast %cst_9 : f32 to vector<1x32xf32>
    %cst_10 = arith.constant 0.000000e+00 : f32
    %9 = vector.broadcast %cst_10 : f32 to vector<1x32xf32>
    %c0_11 = arith.constant 0 : index
    %c0_12 = arith.constant 0 : index
    %10 = vector.load %arg8[%c0_11, %c0_12] : memref<8x128xf32, #tpu.memory_space<vmem>>, vector<1x128xf32>
    %cst_13 = arith.constant dense<0.000000e+00> : vector<1x128xf32>
    %11 = tpu.matmul %8, %7, %cst_13 {dimension_numbers = #tpu.dot_dimension_numbers<[1], [0], [0], [1], [0, 0, 1, 1], [], []>} : vector<1x32xf32>, vector<32x128xf32>, vector<1x128xf32> -> vector<1x128xf32>
    %12 = arith.addf %10, %11 : vector<1x128xf32>
    %13 = vector.extract_strided_slice %12 {offsets = [0, 0], sizes = [1, 32], strides = [1, 1]} : vector<1x128xf32> to vector<1x32xf32>
    %14 = arith.negf %13 : vector<1x32xf32>
    %15 = math.exp %14 : vector<1x32xf32>
    %cst_14 = arith.constant 1.000000e+00 : f32
    %16 = vector.broadcast %cst_14 : f32 to vector<1x32xf32>
    %17 = arith.addf %16, %15 : vector<1x32xf32>
    %18 = arith.divf %16, %17 : vector<1x32xf32>
    %19 = vector.extract_strided_slice %12 {offsets = [0, 32], sizes = [1, 32], strides = [1, 1]} : vector<1x128xf32> to vector<1x32xf32>
    %20 = arith.negf %19 : vector<1x32xf32>
    %21 = math.exp %20 : vector<1x32xf32>
    %cst_15 = arith.constant 1.000000e+00 : f32
    %22 = vector.broadcast %cst_15 : f32 to vector<1x32xf32>
    %23 = arith.addf %22, %21 : vector<1x32xf32>
    %24 = arith.divf %22, %23 : vector<1x32xf32>
    %25 = vector.extract_strided_slice %12 {offsets = [0, 64], sizes = [1, 32], strides = [1, 1]} : vector<1x128xf32> to vector<1x32xf32>
    %26 = math.tanh %25 : vector<1x32xf32>
    %27 = vector.extract_strided_slice %12 {offsets = [0, 96], sizes = [1, 32], strides = [1, 1]} : vector<1x128xf32> to vector<1x32xf32>
    %28 = arith.negf %27 : vector<1x32xf32>
    %29 = math.exp %28 : vector<1x32xf32>
    %cst_16 = arith.constant 1.000000e+00 : f32
    %30 = vector.broadcast %cst_16 : f32 to vector<1x32xf32>
    %31 = arith.addf %30, %29 : vector<1x32xf32>
    %32 = arith.divf %30, %31 : vector<1x32xf32>
    %33 = arith.mulf %24, %9 : vector<1x32xf32>
    %34 = arith.mulf %18, %26 : vector<1x32xf32>
    %35 = arith.addf %33, %34 : vector<1x32xf32>
    %36 = math.tanh %35 : vector<1x32xf32>
    %37 = arith.mulf %32, %36 : vector<1x32xf32>
    %c0_17 = arith.constant 0 : index
    %c0_18 = arith.constant 0 : index
    %38 = vector.load %arg9[%c0_17, %c0_18] : memref<8x32xf32, #tpu.memory_space<vmem>>, vector<1x32xf32>
    tpu.vector_store %arg9[%c0_17, %c0_18], %37 {strides = array<i32>} : memref<8x32xf32, #tpu.memory_space<vmem>>, vector<1x32xf32>,
    %c1 = arith.constant 1 : index
    %c0_19 = arith.constant 0 : index
    %39 = vector.load %arg8[%c1, %c0_19] : memref<8x128xf32, #tpu.memory_space<vmem>>, vector<1x128xf32>
    %cst_20 = arith.constant dense<0.000000e+00> : vector<1x128xf32>
    %40 = tpu.matmul %37, %7, %cst_20 {dimension_numbers = #tpu.dot_dimension_numbers<[1], [0], [0], [1], [0, 0, 1, 1], [], []>} : vector<1x32xf32>, vector<32x128xf32>, vector<1x128xf32> -> vector<1x128xf32>
    %41 = arith.addf %39, %40 : vector<1x128xf32>
    %42 = vector.extract_strided_slice %41 {offsets = [0, 0], sizes = [1, 32], strides = [1, 1]} : vector<1x128xf32> to vector<1x32xf32>
    %43 = arith.negf %42 : vector<1x32xf32>
    %44 = math.exp %43 : vector<1x32xf32>
    %cst_21 = arith.constant 1.000000e+00 : f32
    %45 = vector.broadcast %cst_21 : f32 to vector<1x32xf32>
    %46 = arith.addf %45, %44 : vector<1x32xf32>
    %47 = arith.divf %45, %46 : vector<1x32xf32>
    %48 = vector.extract_strided_slice %41 {offsets = [0, 32], sizes = [1, 32], strides = [1, 1]} : vector<1x128xf32> to vector<1x32xf32>
    %49 = arith.negf %48 : vector<1x32xf32>
    %50 = math.exp %49 : vector<1x32xf32>
    %cst_22 = arith.constant 1.000000e+00 : f32
    %51 = vector.broadcast %cst_22 : f32 to vector<1x32xf32>
    %52 = arith.addf %51, %50 : vector<1x32xf32>
    %53 = arith.divf %51, %52 : vector<1x32xf32>
    %54 = vector.extract_strided_slice %41 {offsets = [0, 64], sizes = [1, 32], strides = [1, 1]} : vector<1x128xf32> to vector<1x32xf32>
    %55 = math.tanh %54 : vector<1x32xf32>
    %56 = vector.extract_strided_slice %41 {offsets = [0, 96], sizes = [1, 32], strides = [1, 1]} : vector<1x128xf32> to vector<1x32xf32>
    %57 = arith.negf %56 : vector<1x32xf32>
    %58 = math.exp %57 : vector<1x32xf32>
    %cst_23 = arith.constant 1.000000e+00 : f32
    %59 = vector.broadcast %cst_23 : f32 to vector<1x32xf32>
    %60 = arith.addf %59, %58 : vector<1x32xf32>
    %61 = arith.divf %59, %60 : vector<1x32xf32>
    %62 = arith.mulf %53, %35 : vector<1x32xf32>
    %63 = arith.mulf %47, %55 : vector<1x32xf32>
    %64 = arith.addf %62, %63 : vector<1x32xf32>
    %65 = math.tanh %64 : vector<1x32xf32>
    %66 = arith.mulf %61, %65 : vector<1x32xf32>
    %c1_24 = arith.constant 1 : index
    %c0_25 = arith.constant 0 : index
    %67 = vector.load %arg9[%c1_24, %c0_25] : memref<8x32xf32, #tpu.memory_space<vmem>>, vector<1x32xf32>
    tpu.vector_store %arg9[%c1_24, %c0_25], %66 {strides = array<i32>} : memref<8x32xf32, #tpu.memory_space<vmem>>, vector<1x32xf32>,
    %c2 = arith.constant 2 : index
    %c0_26 = arith.constant 0 : index
    %68 = vector.load %arg8[%c2, %c0_26] : memref<8x128xf32, #tpu.memory_space<vmem>>, vector<1x128xf32>
    %cst_27 = arith.constant dense<0.000000e+00> : vector<1x128xf32>
    %69 = tpu.matmul %66, %7, %cst_27 {dimension_numbers = #tpu.dot_dimension_numbers<[1], [0], [0], [1], [0, 0, 1, 1], [], []>} : vector<1x32xf32>, vector<32x128xf32>, vector<1x128xf32> -> vector<1x128xf32>
    %70 = arith.addf %68, %69 : vector<1x128xf32>
    %71 = vector.extract_strided_slice %70 {offsets = [0, 0], sizes = [1, 32], strides = [1, 1]} : vector<1x128xf32> to vector<1x32xf32>
    %72 = arith.negf %71 : vector<1x32xf32>
    %73 = math.exp %72 : vector<1x32xf32>
    %cst_28 = arith.constant 1.000000e+00 : f32
    %74 = vector.broadcast %cst_28 : f32 to vector<1x32xf32>
    %75 = arith.addf %74, %73 : vector<1x32xf32>
    %76 = arith.divf %74, %75 : vector<1x32xf32>
    %77 = vector.extract_strided_slice %70 {offsets = [0, 32], sizes = [1, 32], strides = [1, 1]} : vector<1x128xf32> to vector<1x32xf32>
    %78 = arith.negf %77 : vector<1x32xf32>
    %79 = math.exp %78 : vector<1x32xf32>
    %cst_29 = arith.constant 1.000000e+00 : f32
    %80 = vector.broadcast %cst_29 : f32 to vector<1x32xf32>
    %81 = arith.addf %80, %79 : vector<1x32xf32>
    %82 = arith.divf %80, %81 : vector<1x32xf32>
    %83 = vector.extract_strided_slice %70 {offsets = [0, 64], sizes = [1, 32], strides = [1, 1]} : vector<1x128xf32> to vector<1x32xf32>
    %84 = math.tanh %83 : vector<1x32xf32>
    %85 = vector.extract_strided_slice %70 {offsets = [0, 96], sizes = [1, 32], strides = [1, 1]} : vector<1x128xf32> to vector<1x32xf32>
    %86 = arith.negf %85 : vector<1x32xf32>
    %87 = math.exp %86 : vector<1x32xf32>
    %cst_30 = arith.constant 1.000000e+00 : f32
    %88 = vector.broadcast %cst_30 : f32 to vector<1x32xf32>
    %89 = arith.addf %88, %87 : vector<1x32xf32>
    %90 = arith.divf %88, %89 : vector<1x32xf32>
    %91 = arith.mulf %82, %64 : vector<1x32xf32>
    %92 = arith.mulf %76, %84 : vector<1x32xf32>
    %93 = arith.addf %91, %92 : vector<1x32xf32>
    %94 = math.tanh %93 : vector<1x32xf32>
    %95 = arith.mulf %90, %94 : vector<1x32xf32>
    %c2_31 = arith.constant 2 : index
    %c0_32 = arith.constant 0 : index
    %96 = vector.load %arg9[%c2_31, %c0_32] : memref<8x32xf32, #tpu.memory_space<vmem>>, vector<1x32xf32>
    tpu.vector_store %arg9[%c2_31, %c0_32], %95 {strides = array<i32>} : memref<8x32xf32, #tpu.memory_space<vmem>>, vector<1x32xf32>,
    %c3 = arith.constant 3 : index
    %c0_33 = arith.constant 0 : index
    %97 = vector.load %arg8[%c3, %c0_33] : memref<8x128xf32, #tpu.memory_space<vmem>>, vector<1x128xf32>
    %cst_34 = arith.constant dense<0.000000e+00> : vector<1x128xf32>
    %98 = tpu.matmul %95, %7, %cst_34 {dimension_numbers = #tpu.dot_dimension_numbers<[1], [0], [0], [1], [0, 0, 1, 1], [], []>} : vector<1x32xf32>, vector<32x128xf32>, vector<1x128xf32> -> vector<1x128xf32>
    %99 = arith.addf %97, %98 : vector<1x128xf32>
    %100 = vector.extract_strided_slice %99 {offsets = [0, 0], sizes = [1, 32], strides = [1, 1]} : vector<1x128xf32> to vector<1x32xf32>
    %101 = arith.negf %100 : vector<1x32xf32>
    %102 = math.exp %101 : vector<1x32xf32>
    %cst_35 = arith.constant 1.000000e+00 : f32
    %103 = vector.broadcast %cst_35 : f32 to vector<1x32xf32>
    %104 = arith.addf %103, %102 : vector<1x32xf32>
    %105 = arith.divf %103, %104 : vector<1x32xf32>
    %106 = vector.extract_strided_slice %99 {offsets = [0, 32], sizes = [1, 32], strides = [1, 1]} : vector<1x128xf32> to vector<1x32xf32>
    %107 = arith.negf %106 : vector<1x32xf32>
    %108 = math.exp %107 : vector<1x32xf32>
    %cst_36 = arith.constant 1.000000e+00 : f32
    %109 = vector.broadcast %cst_36 : f32 to vector<1x32xf32>
    %110 = arith.addf %109, %108 : vector<1x32xf32>
    %111 = arith.divf %109, %110 : vector<1x32xf32>
    %112 = vector.extract_strided_slice %99 {offsets = [0, 64], sizes = [1, 32], strides = [1, 1]} : vector<1x128xf32> to vector<1x32xf32>
    %113 = math.tanh %112 : vector<1x32xf32>
    %114 = vector.extract_strided_slice %99 {offsets = [0, 96], sizes = [1, 32], strides = [1, 1]} : vector<1x128xf32> to vector<1x32xf32>
    %115 = arith.negf %114 : vector<1x32xf32>
    %116 = math.exp %115 : vector<1x32xf32>
    %cst_37 = arith.constant 1.000000e+00 : f32
    %117 = vector.broadcast %cst_37 : f32 to vector<1x32xf32>
    %118 = arith.addf %117, %116 : vector<1x32xf32>
    %119 = arith.divf %117, %118 : vector<1x32xf32>
    %120 = arith.mulf %111, %93 : vector<1x32xf32>
    %121 = arith.mulf %105, %113 : vector<1x32xf32>
    %122 = arith.addf %120, %121 : vector<1x32xf32>
    %123 = math.tanh %122 : vector<1x32xf32>
    %124 = arith.mulf %119, %123 : vector<1x32xf32>
    %c3_38 = arith.constant 3 : index
    %c0_39 = arith.constant 0 : index
    %125 = vector.load %arg9[%c3_38, %c0_39] : memref<8x32xf32, #tpu.memory_space<vmem>>, vector<1x32xf32>
    tpu.vector_store %arg9[%c3_38, %c0_39], %124 {strides = array<i32>} : memref<8x32xf32, #tpu.memory_space<vmem>>, vector<1x32xf32>,
    %c4 = arith.constant 4 : index
    %c0_40 = arith.constant 0 : index
    %126 = vector.load %arg8[%c4, %c0_40] : memref<8x128xf32, #tpu.memory_space<vmem>>, vector<1x128xf32>
    %cst_41 = arith.constant dense<0.000000e+00> : vector<1x128xf32>
    %127 = tpu.matmul %124, %7, %cst_41 {dimension_numbers = #tpu.dot_dimension_numbers<[1], [0], [0], [1], [0, 0, 1, 1], [], []>} : vector<1x32xf32>, vector<32x128xf32>, vector<1x128xf32> -> vector<1x128xf32>
    %128 = arith.addf %126, %127 : vector<1x128xf32>
    %129 = vector.extract_strided_slice %128 {offsets = [0, 0], sizes = [1, 32], strides = [1, 1]} : vector<1x128xf32> to vector<1x32xf32>
    %130 = arith.negf %129 : vector<1x32xf32>
    %131 = math.exp %130 : vector<1x32xf32>
    %cst_42 = arith.constant 1.000000e+00 : f32
    %132 = vector.broadcast %cst_42 : f32 to vector<1x32xf32>
    %133 = arith.addf %132, %131 : vector<1x32xf32>
    %134 = arith.divf %132, %133 : vector<1x32xf32>
    %135 = vector.extract_strided_slice %128 {offsets = [0, 32], sizes = [1, 32], strides = [1, 1]} : vector<1x128xf32> to vector<1x32xf32>
    %136 = arith.negf %135 : vector<1x32xf32>
    %137 = math.exp %136 : vector<1x32xf32>
    %cst_43 = arith.constant 1.000000e+00 : f32
    %138 = vector.broadcast %cst_43 : f32 to vector<1x32xf32>
    %139 = arith.addf %138, %137 : vector<1x32xf32>
    %140 = arith.divf %138, %139 : vector<1x32xf32>
    %141 = vector.extract_strided_slice %128 {offsets = [0, 64], sizes = [1, 32], strides = [1, 1]} : vector<1x128xf32> to vector<1x32xf32>
    %142 = math.tanh %141 : vector<1x32xf32>
    %143 = vector.extract_strided_slice %128 {offsets = [0, 96], sizes = [1, 32], strides = [1, 1]} : vector<1x128xf32> to vector<1x32xf32>
    %144 = arith.negf %143 : vector<1x32xf32>
    %145 = math.exp %144 : vector<1x32xf32>
    %cst_44 = arith.constant 1.000000e+00 : f32
    %146 = vector.broadcast %cst_44 : f32 to vector<1x32xf32>
    %147 = arith.addf %146, %145 : vector<1x32xf32>
    %148 = arith.divf %146, %147 : vector<1x32xf32>
    %149 = arith.mulf %140, %122 : vector<1x32xf32>
    %150 = arith.mulf %134, %142 : vector<1x32xf32>
    %151 = arith.addf %149, %150 : vector<1x32xf32>
    %152 = math.tanh %151 : vector<1x32xf32>
    %153 = arith.mulf %148, %152 : vector<1x32xf32>
    %c4_45 = arith.constant 4 : index
    %c0_46 = arith.constant 0 : index
    %154 = vector.load %arg9[%c4_45, %c0_46] : memref<8x32xf32, #tpu.memory_space<vmem>>, vector<1x32xf32>
    tpu.vector_store %arg9[%c4_45, %c0_46], %153 {strides = array<i32>} : memref<8x32xf32, #tpu.memory_space<vmem>>, vector<1x32xf32>,
    %c5 = arith.constant 5 : index
    %c0_47 = arith.constant 0 : index
    %155 = vector.load %arg8[%c5, %c0_47] : memref<8x128xf32, #tpu.memory_space<vmem>>, vector<1x128xf32>
    %cst_48 = arith.constant dense<0.000000e+00> : vector<1x128xf32>
    %156 = tpu.matmul %153, %7, %cst_48 {dimension_numbers = #tpu.dot_dimension_numbers<[1], [0], [0], [1], [0, 0, 1, 1], [], []>} : vector<1x32xf32>, vector<32x128xf32>, vector<1x128xf32> -> vector<1x128xf32>
    %157 = arith.addf %155, %156 : vector<1x128xf32>
    %158 = vector.extract_strided_slice %157 {offsets = [0, 0], sizes = [1, 32], strides = [1, 1]} : vector<1x128xf32> to vector<1x32xf32>
    %159 = arith.negf %158 : vector<1x32xf32>
    %160 = math.exp %159 : vector<1x32xf32>
    %cst_49 = arith.constant 1.000000e+00 : f32
    %161 = vector.broadcast %cst_49 : f32 to vector<1x32xf32>
    %162 = arith.addf %161, %160 : vector<1x32xf32>
    %163 = arith.divf %161, %162 : vector<1x32xf32>
    %164 = vector.extract_strided_slice %157 {offsets = [0, 32], sizes = [1, 32], strides = [1, 1]} : vector<1x128xf32> to vector<1x32xf32>
    %165 = arith.negf %164 : vector<1x32xf32>
    %166 = math.exp %165 : vector<1x32xf32>
    %cst_50 = arith.constant 1.000000e+00 : f32
    %167 = vector.broadcast %cst_50 : f32 to vector<1x32xf32>
    %168 = arith.addf %167, %166 : vector<1x32xf32>
    %169 = arith.divf %167, %168 : vector<1x32xf32>
    %170 = vector.extract_strided_slice %157 {offsets = [0, 64], sizes = [1, 32], strides = [1, 1]} : vector<1x128xf32> to vector<1x32xf32>
    %171 = math.tanh %170 : vector<1x32xf32>
    %172 = vector.extract_strided_slice %157 {offsets = [0, 96], sizes = [1, 32], strides = [1, 1]} : vector<1x128xf32> to vector<1x32xf32>
    %173 = arith.negf %172 : vector<1x32xf32>
    %174 = math.exp %173 : vector<1x32xf32>
    %cst_51 = arith.constant 1.000000e+00 : f32
    %175 = vector.broadcast %cst_51 : f32 to vector<1x32xf32>
    %176 = arith.addf %175, %174 : vector<1x32xf32>
    %177 = arith.divf %175, %176 : vector<1x32xf32>
    %178 = arith.mulf %169, %151 : vector<1x32xf32>
    %179 = arith.mulf %163, %171 : vector<1x32xf32>
    %180 = arith.addf %178, %179 : vector<1x32xf32>
    %181 = math.tanh %180 : vector<1x32xf32>
    %182 = arith.mulf %177, %181 : vector<1x32xf32>
    %c5_52 = arith.constant 5 : index
    %c0_53 = arith.constant 0 : index
    %183 = vector.load %arg9[%c5_52, %c0_53] : memref<8x32xf32, #tpu.memory_space<vmem>>, vector<1x32xf32>
    tpu.vector_store %arg9[%c5_52, %c0_53], %182 {strides = array<i32>} : memref<8x32xf32, #tpu.memory_space<vmem>>, vector<1x32xf32>,
    %c6 = arith.constant 6 : index
    %c0_54 = arith.constant 0 : index
    %184 = vector.load %arg8[%c6, %c0_54] : memref<8x128xf32, #tpu.memory_space<vmem>>, vector<1x128xf32>
    %cst_55 = arith.constant dense<0.000000e+00> : vector<1x128xf32>
    %185 = tpu.matmul %182, %7, %cst_55 {dimension_numbers = #tpu.dot_dimension_numbers<[1], [0], [0], [1], [0, 0, 1, 1], [], []>} : vector<1x32xf32>, vector<32x128xf32>, vector<1x128xf32> -> vector<1x128xf32>
    %186 = arith.addf %184, %185 : vector<1x128xf32>
    %187 = vector.extract_strided_slice %186 {offsets = [0, 0], sizes = [1, 32], strides = [1, 1]} : vector<1x128xf32> to vector<1x32xf32>
    %188 = arith.negf %187 : vector<1x32xf32>
    %189 = math.exp %188 : vector<1x32xf32>
    %cst_56 = arith.constant 1.000000e+00 : f32
    %190 = vector.broadcast %cst_56 : f32 to vector<1x32xf32>
    %191 = arith.addf %190, %189 : vector<1x32xf32>
    %192 = arith.divf %190, %191 : vector<1x32xf32>
    %193 = vector.extract_strided_slice %186 {offsets = [0, 32], sizes = [1, 32], strides = [1, 1]} : vector<1x128xf32> to vector<1x32xf32>
    %194 = arith.negf %193 : vector<1x32xf32>
    %195 = math.exp %194 : vector<1x32xf32>
    %cst_57 = arith.constant 1.000000e+00 : f32
    %196 = vector.broadcast %cst_57 : f32 to vector<1x32xf32>
    %197 = arith.addf %196, %195 : vector<1x32xf32>
    %198 = arith.divf %196, %197 : vector<1x32xf32>
    %199 = vector.extract_strided_slice %186 {offsets = [0, 64], sizes = [1, 32], strides = [1, 1]} : vector<1x128xf32> to vector<1x32xf32>
    %200 = math.tanh %199 : vector<1x32xf32>
    %201 = vector.extract_strided_slice %186 {offsets = [0, 96], sizes = [1, 32], strides = [1, 1]} : vector<1x128xf32> to vector<1x32xf32>
    %202 = arith.negf %201 : vector<1x32xf32>
    %203 = math.exp %202 : vector<1x32xf32>
    %cst_58 = arith.constant 1.000000e+00 : f32
    %204 = vector.broadcast %cst_58 : f32 to vector<1x32xf32>
    %205 = arith.addf %204, %203 : vector<1x32xf32>
    %206 = arith.divf %204, %205 : vector<1x32xf32>
    %207 = arith.mulf %198, %180 : vector<1x32xf32>
    %208 = arith.mulf %192, %200 : vector<1x32xf32>
    %209 = arith.addf %207, %208 : vector<1x32xf32>
    %210 = math.tanh %209 : vector<1x32xf32>
    %211 = arith.mulf %206, %210 : vector<1x32xf32>
    %c6_59 = arith.constant 6 : index
    %c0_60 = arith.constant 0 : index
    %212 = vector.load %arg9[%c6_59, %c0_60] : memref<8x32xf32, #tpu.memory_space<vmem>>, vector<1x32xf32>
    tpu.vector_store %arg9[%c6_59, %c0_60], %211 {strides = array<i32>} : memref<8x32xf32, #tpu.memory_space<vmem>>, vector<1x32xf32>,
    %c7 = arith.constant 7 : index
    %c0_61 = arith.constant 0 : index
    %213 = vector.load %arg8[%c7, %c0_61] : memref<8x128xf32, #tpu.memory_space<vmem>>, vector<1x128xf32>
    %cst_62 = arith.constant dense<0.000000e+00> : vector<1x128xf32>
    %214 = tpu.matmul %211, %7, %cst_62 {dimension_numbers = #tpu.dot_dimension_numbers<[1], [0], [0], [1], [0, 0, 1, 1], [], []>} : vector<1x32xf32>, vector<32x128xf32>, vector<1x128xf32> -> vector<1x128xf32>
    %215 = arith.addf %213, %214 : vector<1x128xf32>
    %216 = vector.extract_strided_slice %215 {offsets = [0, 0], sizes = [1, 32], strides = [1, 1]} : vector<1x128xf32> to vector<1x32xf32>
    %217 = arith.negf %216 : vector<1x32xf32>
    %218 = math.exp %217 : vector<1x32xf32>
    %cst_63 = arith.constant 1.000000e+00 : f32
    %219 = vector.broadcast %cst_63 : f32 to vector<1x32xf32>
    %220 = arith.addf %219, %218 : vector<1x32xf32>
    %221 = arith.divf %219, %220 : vector<1x32xf32>
    %222 = vector.extract_strided_slice %215 {offsets = [0, 32], sizes = [1, 32], strides = [1, 1]} : vector<1x128xf32> to vector<1x32xf32>
    %223 = arith.negf %222 : vector<1x32xf32>
    %224 = math.exp %223 : vector<1x32xf32>
    %cst_64 = arith.constant 1.000000e+00 : f32
    %225 = vector.broadcast %cst_64 : f32 to vector<1x32xf32>
    %226 = arith.addf %225, %224 : vector<1x32xf32>
    %227 = arith.divf %225, %226 : vector<1x32xf32>
    %228 = vector.extract_strided_slice %215 {offsets = [0, 64], sizes = [1, 32], strides = [1, 1]} : vector<1x128xf32> to vector<1x32xf32>
    %229 = math.tanh %228 : vector<1x32xf32>
    %230 = vector.extract_strided_slice %215 {offsets = [0, 96], sizes = [1, 32], strides = [1, 1]} : vector<1x128xf32> to vector<1x32xf32>
    %231 = arith.negf %230 : vector<1x32xf32>
    %232 = math.exp %231 : vector<1x32xf32>
    %cst_65 = arith.constant 1.000000e+00 : f32
    %233 = vector.broadcast %cst_65 : f32 to vector<1x32xf32>
    %234 = arith.addf %233, %232 : vector<1x32xf32>
    %235 = arith.divf %233, %234 : vector<1x32xf32>
    %236 = arith.mulf %227, %209 : vector<1x32xf32>
    %237 = arith.mulf %221, %229 : vector<1x32xf32>
    %238 = arith.addf %236, %237 : vector<1x32xf32>
    %239 = math.tanh %238 : vector<1x32xf32>
    %240 = arith.mulf %235, %239 : vector<1x32xf32>
    %c7_66 = arith.constant 7 : index
    %c0_67 = arith.constant 0 : index
    %241 = vector.load %arg9[%c7_66, %c0_67] : memref<8x32xf32, #tpu.memory_space<vmem>>, vector<1x32xf32>
    tpu.vector_store %arg9[%c7_66, %c0_67], %240 {strides = array<i32>} : memref<8x32xf32, #tpu.memory_space<vmem>>, vector<1x32xf32>,
    %c0_68 = arith.constant 0 : index
    %c0_69 = arith.constant 0 : index
    %242 = vector.load %arg9[%c0_68, %c0_69] : memref<8x32xf32, #tpu.memory_space<vmem>>, vector<8x32xf32>
    %c0_70 = arith.constant 0 : index
    %c0_71 = arith.constant 0 : index
    %243 = vector.load %arg5[%c0_70, %c0_71] : memref<32x128xf32, #tpu.memory_space<vmem>>, vector<32x128xf32>
    %cst_72 = arith.constant dense<0.000000e+00> : vector<8x128xf32>
    %244 = tpu.matmul %242, %243, %cst_72 {dimension_numbers = #tpu.dot_dimension_numbers<[1], [0], [0], [1], [0, 0, 1, 1], [], []>} : vector<8x32xf32>, vector<32x128xf32>, vector<8x128xf32> -> vector<8x128xf32>
    %c0_73 = arith.constant 0 : index
    %c0_74 = arith.constant 0 : index
    %245 = vector.load %arg6[%c0_73, %c0_74] : memref<1x128xf32, #tpu.memory_space<vmem>>, vector<1x128xf32>
    %246 = vector.broadcast %245 : vector<1x128xf32> to vector<8x128xf32>
    %247 = arith.addf %244, %246 : vector<8x128xf32>
    %cst_75 = arith.constant dense<0xFF800000> : vector<8xf32>
    %248 = vector.multi_reduction <maximumf>, %247, %cst_75 [1] : vector<8x128xf32> to vector<8xf32>
    %249 = vector.shape_cast %248 : vector<8xf32> to vector<8x1xf32>
    %250 = vector.broadcast %249 : vector<8x1xf32> to vector<8x128xf32>
    %251 = arith.subf %247, %250 : vector<8x128xf32>
    %252 = math.exp %251 : vector<8x128xf32>
    %cst_76 = arith.constant dense<0.000000e+00> : vector<8xf32>
    %253 = vector.multi_reduction <add>, %252, %cst_76 [1] : vector<8x128xf32> to vector<8xf32>
    %254 = vector.shape_cast %253 : vector<8xf32> to vector<8x1xf32>
    %255 = math.log %254 : vector<8x1xf32>
    %256 = vector.broadcast %255 : vector<8x1xf32> to vector<8x128xf32>
    %257 = arith.subf %251, %256 : vector<8x128xf32>
    %c0_77 = arith.constant 0 : index
    %c0_78 = arith.constant 0 : index
    %258 = vector.load %arg7[%c0_77, %c0_78] : memref<8x128xf32, #tpu.memory_space<vmem>>, vector<8x128xf32>
    tpu.vector_store %arg7[%c0_77, %c0_78], %257 {strides = array<i32>} : memref<8x128xf32, #tpu.memory_space<vmem>>, vector<8x128xf32>,
    return
  }
  func.func @transform_0(%arg0: i32) -> (i32, i32) {
    %c0_i32 = arith.constant 0 : i32
    %c0_i32_0 = arith.constant 0 : i32
    %c0_i32_1 = arith.constant 0 : i32
    return %c0_i32, %c0_i32_0 : i32, i32
  }
  func.func @transform_1(%arg0: i32) -> (i32, i32) {
    %c0_i32 = arith.constant 0 : i32
    %c0_i32_0 = arith.constant 0 : i32
    %c0_i32_1 = arith.constant 0 : i32
    return %c0_i32, %c0_i32_0 : i32, i32
  }
  func.func @transform_2(%arg0: i32) -> (i32, i32) {
    %c0_i32 = arith.constant 0 : i32
    %c0_i32_0 = arith.constant 0 : i32
    %c0_i32_1 = arith.constant 0 : i32
    return %c0_i32, %c0_i32_0 : i32, i32
  }
  func.func @transform_3(%arg0: i32) -> (i32, i32) {
    %c0_i32 = arith.constant 0 : i32
    %c0_i32_0 = arith.constant 0 : i32
    %c0_i32_1 = arith.constant 0 : i32
    return %c0_i32, %c0_i32_0 : i32, i32
  }
  func.func @transform_4(%arg0: i32) -> (i32, i32) {
    %c0_i32 = arith.constant 0 : i32
    %c0_i32_0 = arith.constant 0 : i32
    %c0_i32_1 = arith.constant 0 : i32
    return %c0_i32, %c0_i32_0 : i32, i32
  }
  func.func @transform_5(%arg0: i32) -> (i32, i32) {
    %c0_i32 = arith.constant 0 : i32
    %c0_i32_0 = arith.constant 0 : i32
    %c0_i32_1 = arith.constant 0 : i32
    return %c0_i32, %c0_i32_0 : i32, i32
  }
  func.func @transform_6(%arg0: i32) -> (i32, i32) {
    %c0_i32 = arith.constant 0 : i32
    %c0_i32_0 = arith.constant 0 : i32
    %c0_i32_1 = arith.constant 0 : i32
    return %c0_i32, %c0_i32_0 : i32, i32
  }
}

</mosaic_0001>

<llo_original>
// kernel: tpu_custom_call.1
$region0: #{tpu_custom_call.1}
  #allocation0 [shape = 'u32[]', space=smem, size = 0x4, offset = 0x4, fixed_abs, tag = 'smem constant byte address 0x4 - core index']
  #allocation1 [shape = 'u32[144,128]{1,0:T(1,128)}', space=vmem, size = 0x12000, scoped, tag = 'internal scratch']
  #allocation2 [shape = 'f32[8,128]{1,0:T(8,128)}', space=vmem, size = 0x1000, scoped, tag = 'scratch operand']
  #allocation3 [shape = 'f32[8,32]{1,0:T(8,128)}', space=vmem, size = 0x1000, scoped, tag = 'scratch operand']
  %s0 = inlined_call_operand.hbm [shape: f32[8,16], index: 0, kind: input, shape index: {}]
  %s1 = inlined_call_operand.hbm [shape: f32[16,128], index: 1, kind: input, shape index: {}]
  %s2 = inlined_call_operand.hbm [shape: f32[32,128], index: 2, kind: input, shape index: {}]
  %s3 = inlined_call_operand.vmem [shape: f32[1,128], index: 3, kind: input, shape index: {}]
  %s4 = inlined_call_operand.hbm [shape: f32[32,128], index: 4, kind: input, shape index: {}]
  %s5 = inlined_call_operand.vmem [shape: f32[1,128], index: 5, kind: input, shape index: {}]
  %s6 = inlined_call_operand.hbm [shape: f32[8,128], index: 6, kind: output, shape index: {}]
  %s7 = sld [smem:[#allocation0]]
  $region50: #{tpu_custom_call.1} parent=0
    _
  %s9 = ssub.s32 1, %s7
  %s10 = scalar_select 0, %s9, %s7
  $region1: #{tpu_custom_call.1} parent=0
    #allocation4 [shape = 'u8[4096]{0}', space=vmem, size = 0x1000, scoped, tag = 'input window, operand 0, single buffered']
    #allocation5 [shape = 's32[1]{0}', space=sflag, size = 0x4, scoped, tag = 'scoped memory for tpu_custom_call.1']
    #allocation6 [shape = 's32[1]{0}', space=sflag, size = 0x4, scoped, tag = 'scoped memory for tpu_custom_call.1']
    #allocation7 [shape = 'u8[8192]{0}', space=vmem, size = 0x2000, scoped, tag = 'input window, operand 1, single buffered']
    #allocation8 [shape = 's32[1]{0}', space=sflag, size = 0x4, scoped, tag = 'scoped memory for tpu_custom_call.1']
    #allocation9 [shape = 'u8[16384]{0}', space=vmem, size = 0x4000, scoped, tag = 'input window, operand 2, single buffered']
    #allocation10 [shape = 'u8[16384]{0}', space=vmem, size = 0x4000, scoped, tag = 'input window, operand 4, single buffered']
    #allocation11 [shape = 's32[1]{0}', space=sflag, size = 0x4, scoped, tag = 'scoped memory for tpu_custom_call.1']
    #allocation12 [shape = 'u8[4096]{0}', space=vmem, size = 0x1000, scoped, tag = 'output window, operand 0, single buffered']
    %11 = vsyncpa [#allocation5], 0
    %12 = vsyncpa [#allocation8], 0
    %13 = vsyncpa [#allocation11], 0
    %14 = vsyncpa [#allocation6], 0
    // Predicated region
    $region2: #{tpu_custom_call.1} parent=1 // pred_check
      _
    $region3: #{tpu_custom_call.1} parent=1 // pred_check_branch
      %16 = sbr.rel (0) target = $region5
    $region4: #{tpu_custom_call.1} parent=1 // pred_region
      %s18 = ssub.s32 128, 128
      %19 = vsyncadd [#allocation5], %s18
      %s21 = sshll.u32 [#allocation4], 4
      %s22 = int_to_ptr.vmem [resolvable:$true] %s21
      %24 = dma.hbm_to_vmem [thread:$0]  %s0, 128, %s22, [#allocation5]
    $region5: #{tpu_custom_call.1} parent=1 // pred_fallthru
      _
    // Predicated region
    $region6: #{tpu_custom_call.1} parent=1 // pred_check
      _
    $region7: #{tpu_custom_call.1} parent=1 // pred_check_branch
      %26 = sbr.rel (0) target = $region9
    $region8: #{tpu_custom_call.1} parent=1 // pred_region
      %s28 = ssub.s32 256, 256
      %29 = vsyncadd [#allocation8], %s28
      %s30 = sshll.u32 [#allocation7], 4
      %s31 = int_to_ptr.vmem [resolvable:$true] %s30
      %36 = dma.hbm_to_vmem [thread:$0]  %s1, 256, %s31, [#allocation8], 128, 128, 8
    $region9: #{tpu_custom_call.1} parent=1 // pred_fallthru
      _
    // Predicated region
    $region10: #{tpu_custom_call.1} parent=1 // pred_check
      _
    $region11: #{tpu_custom_call.1} parent=1 // pred_check_branch
      %38 = sbr.rel (0) target = $region13
    $region12: #{tpu_custom_call.1} parent=1 // pred_region
      %s40 = ssub.s32 512, 512
      %41 = vsyncadd [#allocation8], %s40
      %s42 = sshll.u32 [#allocation9], 4
      %s43 = int_to_ptr.vmem [resolvable:$true] %s42
      %48 = dma.hbm_to_vmem [thread:$0]  %s2, 512, %s43, [#allocation8], 128, 128, 8
    $region13: #{tpu_custom_call.1} parent=1 // pred_fallthru
      _
    // Predicated region
    $region14: #{tpu_custom_call.1} parent=1 // pred_check
      _
    $region15: #{tpu_custom_call.1} parent=1 // pred_check_branch
      %50 = sbr.rel (0) target = $region17
    $region16: #{tpu_custom_call.1} parent=1 // pred_region
      _
    $region17: #{tpu_custom_call.1} parent=1 // pred_fallthru
      _
    // Predicated region
    $region18: #{tpu_custom_call.1} parent=1 // pred_check
      _
    $region19: #{tpu_custom_call.1} parent=1 // pred_check_branch
      %52 = sbr.rel (0) target = $region21
    $region20: #{tpu_custom_call.1} parent=1 // pred_region
      %s54 = ssub.s32 512, 512
      %55 = vsyncadd [#allocation11], %s54
      %s56 = sshll.u32 [#allocation10], 4
      %s57 = int_to_ptr.vmem [resolvable:$true] %s56
      %62 = dma.hbm_to_vmem [thread:$0]  %s4, 512, %s57, [#allocation11], 128, 128, 8
    $region21: #{tpu_custom_call.1} parent=1 // pred_fallthru
      _
    // Predicated region
    $region22: #{tpu_custom_call.1} parent=1 // pred_check
      _
    $region23: #{tpu_custom_call.1} parent=1 // pred_check_branch
      %64 = sbr.rel (0) target = $region25
    $region24: #{tpu_custom_call.1} parent=1 // pred_region
      _
    $region25: #{tpu_custom_call.1} parent=1 // pred_fallthru
      _
    // Predicated region
    $region26: #{tpu_custom_call.1} parent=1 // pred_check
      _
    $region27: #{tpu_custom_call.1} parent=1 // pred_check_branch
      %66 = sbr.rel (0) target = $region29
    $region28: #{tpu_custom_call.1} parent=1 // pred_region
      %67 = dma.done [#allocation5], 128
    $region29: #{tpu_custom_call.1} parent=1 // pred_fallthru
      _
    // Predicated region
    $region30: #{tpu_custom_call.1} parent=1 // pred_check
      _
    $region31: #{tpu_custom_call.1} parent=1 // pred_check_branch
      %69 = sbr.rel (0) target = $region33
    $region32: #{tpu_custom_call.1} parent=1 // pred_region
      %70 = dma.done [#allocation8], 256
    $region33: #{tpu_custom_call.1} parent=1 // pred_fallthru
      _
    // Predicated region
    $region34: #{tpu_custom_call.1} parent=1 // pred_check
      _
    $region35: #{tpu_custom_call.1} parent=1 // pred_check_branch
      %72 = sbr.rel (0) target = $region37
    $region36: #{tpu_custom_call.1} parent=1 // pred_region
      %73 = dma.done [#allocation8], 512
    $region37: #{tpu_custom_call.1} parent=1 // pred_fallthru
      _
    // Predicated region
    $region38: #{tpu_custom_call.1} parent=1 // pred_check
      _
    $region39: #{tpu_custom_call.1} parent=1 // pred_check_branch
      %75 = sbr.rel (0) target = $region41
    $region40: #{tpu_custom_call.1} parent=1 // pred_region
      %76 = dma.done [#allocation11], 512
    $region41: #{tpu_custom_call.1} parent=1 // pred_fallthru
      _
    %v77 = vld [vmem:[#allocation4] sm:$0xff]
    %v78 = vld [vmem:[#allocation7] sm:$0xff]
    %v79 = vld [vmem:[#allocation7 + $0x8] sm:$0xff]
    %v80 = vld [vmem:[%s3] sm:$0x1]
    %v82 = vlaneseq
    %v83 = vshrl.u32 %v82, 7
    %v84 = vsub.s32 0, %v83
    %v85 = vrot.slane %v80, %v84
    %vm87 = vcmask 130048
    %v89 = vsel %vm87, %v77, 0
    %91 = vmatprep.subr.mxu0 0.0
    %92 = vmatpush1.msra.mxu0 %v78
    %93 = vmatprep.subr.mxu0 0.0
    %94 = vmatpush1.msra.mxu0 %v79
    %95 = vmatprep.subr.mxu0 0.0
    %96 = vmatpush1.msra.mxu0 0.0
    %97 = vmatprep.subr.mxu0 0.0
    %98 = vmatpush1.msra.mxu0 0.0
    %99 = vmatprep.subr.mxu0 0.0
    %100 = vmatpush1.msra.mxu0 0.0
    %101 = vmatprep.subr.mxu0 0.0
    %102 = vmatpush1.msra.mxu0 0.0
    %103 = vmatprep.subr.mxu0 0.0
    %104 = vmatpush1.msra.mxu0 0.0
    %105 = vmatprep.subr.mxu0 0.0
    %106 = vmatpush1.msra.mxu0 0.0
    %107 = vmatprep.subr.mxu0 0.0
    %108 = vmatpush1.msra.mxu0 0.0
    %109 = vmatprep.subr.mxu0 0.0
    %110 = vmatpush1.msra.mxu0 0.0
    %111 = vmatprep.subr.mxu0 0.0
    %112 = vmatpush1.msra.mxu0 0.0
    %113 = vmatprep.subr.mxu0 0.0
    %114 = vmatpush1.msra.mxu0 0.0
    %115 = vmatprep.subr.mxu0 0.0
    %116 = vmatpush1.msra.mxu0 0.0
    %117 = vmatprep.subr.mxu0 0.0
    %118 = vmatpush1.msra.mxu0 0.0
    %119 = vmatprep.subr.mxu0 0.0
    %120 = vmatpush1.msra.mxu0 0.0
    %121 = vmatprep.subr.mxu0 0.0
    %122 = vmatpush1.msra.mxu0 0.0
    %123 = vmatprep.subr.mxu0 0.0
    %124 = vmatpush1.msra.mxu0 0.0
    %125 = vmatprep.subr.mxu0 0.0
    %126 = vmatpush1.msra.mxu0 0.0
    %127 = vmatprep.subr.mxu0 0.0
    %128 = vmatpush1.msra.mxu0 0.0
    %129 = vmatprep.subr.mxu0 0.0
    %130 = vmatpush1.msra.mxu0 0.0
    %131 = vmatprep.subr.mxu0 0.0
    %132 = vmatpush1.msra.mxu0 0.0
    %133 = vmatprep.subr.mxu0 0.0
    %134 = vmatpush1.msra.mxu0 0.0
    %135 = vmatprep.subr.mxu0 0.0
    %136 = vmatpush1.msra.mxu0 0.0
    %137 = vmatprep.subr.mxu0 0.0
    %138 = vmatpush1.msra.mxu0 0.0
    %139 = vmatprep.subr.mxu0 0.0
    %140 = vmatpush1.msra.mxu0 0.0
    %141 = vmatprep.subr.mxu0 0.0
    %142 = vmatpush1.msra.mxu0 0.0
    %143 = vmatprep.subr.mxu0 0.0
    %144 = vmatpush1.msra.mxu0 0.0
    %145 = vmatprep.subr.mxu0 0.0
    %146 = vmatpush1.msra.mxu0 0.0
    %147 = vmatprep.subr.mxu0 0.0
    %148 = vmatpush1.msra.mxu0 0.0
    %149 = vmatprep.subr.mxu0 0.0
    %150 = vmatpush1.msra.mxu0 0.0
    %151 = vmatprep.subr.mxu0 0.0
    %152 = vmatpush1.msra.mxu0 0.0
    %153 = vmatprep.subr.mxu0 0.0
    %154 = vmatpush1.msra.mxu0 0.0
    %155 = vmatprep.mubr.f32.mxu0 0.0
    %156 = vmatmul.mubr.f32.gmra.mrb[0].mxu0 %v89
    %v157 = vpop.f32.mrb[0].mxu0
    %v158 = vadd.f32 %v85, %v157
    %v159 = vpop.f32.mrb[0].mxu0
    %160 = vdwg.mxu0
    %161 = vst [vmem:[#allocation2] sm:$0xff] %v158
    %v162 = vld [vmem:[#allocation9] sm:$0xff]
    %v163 = vld [vmem:[#allocation9 + $0x8] sm:$0xff]
    %v164 = vld [vmem:[#allocation9 + $0x10] sm:$0xff]
    %v165 = vld [vmem:[#allocation9 + $0x18] sm:$0xff]
    %v166 = vld [vmem:[#allocation2] sm:$0x1]
    %vm167 = vcmask 261120
    %v169 = vsel %vm167, 0.0, 0
    %171 = vmatprep.subr.mxu0 0.0
    %172 = vmatpush1.msra.mxu0 %v162
    %173 = vmatprep.subr.mxu0 0.0
    %174 = vmatpush1.msra.mxu0 %v163
    %175 = vmatprep.subr.mxu0 0.0
    %176 = vmatpush1.msra.mxu0 %v164
    %177 = vmatprep.subr.mxu0 0.0
    %178 = vmatpush1.msra.mxu0 %v165
    %179 = vmatprep.subr.mxu0 0.0
    %180 = vmatpush1.msra.mxu0 0.0
    %181 = vmatprep.subr.mxu0 0.0
    %182 = vmatpush1.msra.mxu0 0.0
    %183 = vmatprep.subr.mxu0 0.0
    %184 = vmatpush1.msra.mxu0 0.0
    %185 = vmatprep.subr.mxu0 0.0
    %186 = vmatpush1.msra.mxu0 0.0
    %187 = vmatprep.subr.mxu0 0.0
    %188 = vmatpush1.msra.mxu0 0.0
    %189 = vmatprep.subr.mxu0 0.0
    %190 = vmatpush1.msra.mxu0 0.0
    %191 = vmatprep.subr.mxu0 0.0
    %192 = vmatpush1.msra.mxu0 0.0
    %193 = vmatprep.subr.mxu0 0.0
    %194 = vmatpush1.msra.mxu0 0.0
    %195 = vmatprep.subr.mxu0 0.0
    %196 = vmatpush1.msra.mxu0 0.0
    %197 = vmatprep.subr.mxu0 0.0
    %198 = vmatpush1.msra.mxu0 0.0
    %199 = vmatprep.subr.mxu0 0.0
    %200 = vmatpush1.msra.mxu0 0.0
    %201 = vmatprep.subr.mxu0 0.0
    %202 = vmatpush1.msra.mxu0 0.0
    %203 = vmatprep.subr.mxu0 0.0
    %204 = vmatpush1.msra.mxu0 0.0
    %205 = vmatprep.subr.mxu0 0.0
    %206 = vmatpush1.msra.mxu0 0.0
    %207 = vmatprep.subr.mxu0 0.0
    %208 = vmatpush1.msra.mxu0 0.0
    %209 = vmatprep.subr.mxu0 0.0
    %210 = vmatpush1.msra.mxu0 0.0
    %211 = vmatprep.subr.mxu0 0.0
    %212 = vmatpush1.msra.mxu0 0.0
    %213 = vmatprep.subr.mxu0 0.0
    %214 = vmatpush1.msra.mxu0 0.0
    %215 = vmatprep.subr.mxu0 0.0
    %216 = vmatpush1.msra.mxu0 0.0
    %217 = vmatprep.subr.mxu0 0.0
    %218 = vmatpush1.msra.mxu0 0.0
    %219 = vmatprep.subr.mxu0 0.0
    %220 = vmatpush1.msra.mxu0 0.0
    %221 = vmatprep.subr.mxu0 0.0
    %222 = vmatpush1.msra.mxu0 0.0
    %223 = vmatprep.subr.mxu0 0.0
    %224 = vmatpush1.msra.mxu0 0.0
    %225 = vmatprep.subr.mxu0 0.0
    %226 = vmatpush1.msra.mxu0 0.0
    %227 = vmatprep.subr.mxu0 0.0
    %228 = vmatpush1.msra.mxu0 0.0
    %229 = vmatprep.subr.mxu0 0.0
    %230 = vmatpush1.msra.mxu0 0.0
    %231 = vmatprep.subr.mxu0 0.0
    %232 = vmatpush1.msra.mxu0 0.0
    %233 = vmatprep.subr.mxu0 0.0
    %234 = vmatpush1.msra.mxu0 0.0
    %235 = vmatprep.mubr.f32.mxu0 0.0
    %236 = vmatmul.mubr.f32.gmra.mrb[0].mxu0 %v169
    %v237 = vpop.f32.mrb[0].mxu0
    %v238 = vadd.f32 0.0, %v237
    %v239 = vpop.f32.mrb[0].mxu0
    %240 = vdwg.mxu0
    %v241 = vadd.f32 %v166, %v238
    %v242 = vxor.u32 %v241, 2147483648
    %v243 = vmul.f32 %v242, 1.442695
    %v244 = vpow.pop %v243
    %v245 = vadd.f32 %v244, 1.0
    %v246 = vrcp.pop %v245
    %v247 = vmul.f32 1.0, %v246
    %v248 = vtanh.pop %v241
    %v249 = vmul.f32 %v247, 0.0
    %251 = vrot.lane.b32.xlu0 %v248, 64
    %v252 = vpop.permute.xlu0 %251
    %v254 = vmul.f32 %v247, %v252
    %256 = vrot.lane.b32.xlu0 %v254, 32
    %v257 = vpop.permute.xlu0 %256
    %v259 = vadd.f32 %v249, %v257
    %v260 = vtanh.pop %v259
    %262 = vrot.lane.b32.xlu0 %v260, 64
    %v263 = vpop.permute.xlu0 %262
    %v265 = vmul.f32 %v247, %v263
    %267 = vrot.lane.b32.xlu0 %v265, 32
    %v268 = vpop.permute.xlu0 %267
    %vm270 = vcmask 253952
    %271 = vst.msk [vmem:[#allocation3] sm:$0x1] %vm270, %v268
    %v272 = vld [vmem:[#allocation2 + $0x1] sm:$0x1]
    %v273 = vsel %vm167, %v268, 0
    %275 = vmatprep.subr.mxu0 0.0
    %276 = vmatpush1.msra.mxu0 %v162
    %277 = vmatprep.subr.mxu0 0.0
    %278 = vmatpush1.msra.mxu0 %v163
    %279 = vmatprep.subr.mxu0 0.0
    %280 = vmatpush1.msra.mxu0 %v164
    %281 = vmatprep.subr.mxu0 0.0
    %282 = vmatpush1.msra.mxu0 %v165
    %283 = vmatprep.subr.mxu0 0.0
    %284 = vmatpush1.msra.mxu0 0.0
    %285 = vmatprep.subr.mxu0 0.0
    %286 = vmatpush1.msra.mxu0 0.0
    %287 = vmatprep.subr.mxu0 0.0
    %288 = vmatpush1.msra.mxu0 0.0
    %289 = vmatprep.subr.mxu0 0.0
    %290 = vmatpush1.msra.mxu0 0.0
    %291 = vmatprep.subr.mxu0 0.0
    %292 = vmatpush1.msra.mxu0 0.0
    %293 = vmatprep.subr.mxu0 0.0
    %294 = vmatpush1.msra.mxu0 0.0
    %295 = vmatprep.subr.mxu0 0.0
    %296 = vmatpush1.msra.mxu0 0.0
    %297 = vmatprep.subr.mxu0 0.0
    %298 = vmatpush1.msra.mxu0 0.0
    %299 = vmatprep.subr.mxu0 0.0
    %300 = vmatpush1.msra.mxu0 0.0
    %301 = vmatprep.subr.mxu0 0.0
    %302 = vmatpush1.msra.mxu0 0.0
    %303 = vmatprep.subr.mxu0 0.0
    %304 = vmatpush1.msra.mxu0 0.0
    %305 = vmatprep.subr.mxu0 0.0
    %306 = vmatpush1.msra.mxu0 0.0
    %307 = vmatprep.subr.mxu0 0.0
    %308 = vmatpush1.msra.mxu0 0.0
    %309 = vmatprep.subr.mxu0 0.0
    %310 = vmatpush1.msra.mxu0 0.0
    %311 = vmatprep.subr.mxu0 0.0
    %312 = vmatpush1.msra.mxu0 0.0
    %313 = vmatprep.subr.mxu0 0.0
    %314 = vmatpush1.msra.mxu0 0.0
    %315 = vmatprep.subr.mxu0 0.0
    %316 = vmatpush1.msra.mxu0 0.0
    %317 = vmatprep.subr.mxu0 0.0
    %318 = vmatpush1.msra.mxu0 0.0
    %319 = vmatprep.subr.mxu0 0.0
    %320 = vmatpush1.msra.mxu0 0.0
    %321 = vmatprep.subr.mxu0 0.0
    %322 = vmatpush1.msra.mxu0 0.0
    %323 = vmatprep.subr.mxu0 0.0
    %324 = vmatpush1.msra.mxu0 0.0
    %325 = vmatprep.subr.mxu0 0.0
    %326 = vmatpush1.msra.mxu0 0.0
    %327 = vmatprep.subr.mxu0 0.0
    %328 = vmatpush1.msra.mxu0 0.0
    %329 = vmatprep.subr.mxu0 0.0
    %330 = vmatpush1.msra.mxu0 0.0
    %331 = vmatprep.subr.mxu0 0.0
    %332 = vmatpush1.msra.mxu0 0.0
    %333 = vmatprep.subr.mxu0 0.0
    %334 = vmatpush1.msra.mxu0 0.0
    %335 = vmatprep.subr.mxu0 0.0
    %336 = vmatpush1.msra.mxu0 0.0
    %337 = vmatprep.subr.mxu0 0.0
    %338 = vmatpush1.msra.mxu0 0.0
    %339 = vmatprep.mubr.f32.mxu0 0.0
    %340 = vmatmul.mubr.f32.gmra.mrb[0].mxu0 %v273
    %v341 = vpop.f32.mrb[0].mxu0
    %v342 = vadd.f32 0.0, %v341
    %v343 = vpop.f32.mrb[0].mxu0
    %344 = vdwg.mxu0
    %v345 = vadd.f32 %v272, %v342
    %v346 = vxor.u32 %v345, 2147483648
    %v347 = vmul.f32 %v346, 1.442695
    %v348 = vpow.pop %v347
    %v349 = vadd.f32 %v348, 1.0
    %v350 = vrcp.pop %v349
    %v351 = vmul.f32 1.0, %v350
    %v352 = vtanh.pop %v345
    %v353 = vmul.f32 %v351, %v259
    %355 = vrot.lane.b32.xlu0 %v352, 64
    %v356 = vpop.permute.xlu0 %355
    %v358 = vmul.f32 %v351, %v356
    %360 = vrot.lane.b32.xlu0 %v358, 32
    %v361 = vpop.permute.xlu0 %360
    %v363 = vadd.f32 %v353, %v361
    %v364 = vtanh.pop %v363
    %366 = vrot.lane.b32.xlu0 %v364, 64
    %v367 = vpop.permute.xlu0 %366
    %v369 = vmul.f32 %v351, %v367
    %371 = vrot.lane.b32.xlu0 %v369, 32
    %v372 = vpop.permute.xlu0 %371
    %374 = vst.msk [vmem:[#allocation3 + $0x1] sm:$0x1] %vm270, %v372
    %v375 = vld [vmem:[#allocation2 + $0x2] sm:$0x1]
    %v376 = vsel %vm167, %v372, 0
    %378 = vmatprep.subr.mxu0 0.0
    %379 = vmatpush1.msra.mxu0 %v162
    %380 = vmatprep.subr.mxu0 0.0
    %381 = vmatpush1.msra.mxu0 %v163
    %382 = vmatprep.subr.mxu0 0.0
    %383 = vmatpush1.msra.mxu0 %v164
    %384 = vmatprep.subr.mxu0 0.0
    %385 = vmatpush1.msra.mxu0 %v165
    %386 = vmatprep.subr.mxu0 0.0
    %387 = vmatpush1.msra.mxu0 0.0
    %388 = vmatprep.subr.mxu0 0.0
    %389 = vmatpush1.msra.mxu0 0.0
    %390 = vmatprep.subr.mxu0 0.0
    %391 = vmatpush1.msra.mxu0 0.0
    %392 = vmatprep.subr.mxu0 0.0
    %393 = vmatpush1.msra.mxu0 0.0
    %394 = vmatprep.subr.mxu0 0.0
    %395 = vmatpush1.msra.mxu0 0.0
    %396 = vmatprep.subr.mxu0 0.0
    %397 = vmatpush1.msra.mxu0 0.0
    %398 = vmatprep.subr.mxu0 0.0
    %399 = vmatpush1.msra.mxu0 0.0
    %400 = vmatprep.subr.mxu0 0.0
    %401 = vmatpush1.msra.mxu0 0.0
    %402 = vmatprep.subr.mxu0 0.0
    %403 = vmatpush1.msra.mxu0 0.0
    %404 = vmatprep.subr.mxu0 0.0
    %405 = vmatpush1.msra.mxu0 0.0
    %406 = vmatprep.subr.mxu0 0.0
    %407 = vmatpush1.msra.mxu0 0.0
    %408 = vmatprep.subr.mxu0 0.0
    %409 = vmatpush1.msra.mxu0 0.0
    %410 = vmatprep.subr.mxu0 0.0
    %411 = vmatpush1.msra.mxu0 0.0
    %412 = vmatprep.subr.mxu0 0.0
    %413 = vmatpush1.msra.mxu0 0.0
    %414 = vmatprep.subr.mxu0 0.0
    %415 = vmatpush1.msra.mxu0 0.0
    %416 = vmatprep.subr.mxu0 0.0
    %417 = vmatpush1.msra.mxu0 0.0
    %418 = vmatprep.subr.mxu0 0.0
    %419 = vmatpush1.msra.mxu0 0.0
    %420 = vmatprep.subr.mxu0 0.0
    %421 = vmatpush1.msra.mxu0 0.0
    %422 = vmatprep.subr.mxu0 0.0
    %423 = vmatpush1.msra.mxu0 0.0
    %424 = vmatprep.subr.mxu0 0.0
    %425 = vmatpush1.msra.mxu0 0.0
    %426 = vmatprep.subr.mxu0 0.0
    %427 = vmatpush1.msra.mxu0 0.0
    %428 = vmatprep.subr.mxu0 0.0
    %429 = vmatpush1.msra.mxu0 0.0
    %430 = vmatprep.subr.mxu0 0.0
    %431 = vmatpush1.msra.mxu0 0.0
    %432 = vmatprep.subr.mxu0 0.0
    %433 = vmatpush1.msra.mxu0 0.0
    %434 = vmatprep.subr.mxu0 0.0
    %435 = vmatpush1.msra.mxu0 0.0
    %436 = vmatprep.subr.mxu0 0.0
    %437 = vmatpush1.msra.mxu0 0.0
    %438 = vmatprep.subr.mxu0 0.0
    %439 = vmatpush1.msra.mxu0 0.0
    %440 = vmatprep.subr.mxu0 0.0
    %441 = vmatpush1.msra.mxu0 0.0
    %442 = vmatprep.mubr.f32.mxu0 0.0
    %443 = vmatmul.mubr.f32.gmra.mrb[0].mxu0 %v376
    %v444 = vpop.f32.mrb[0].mxu0
    %v445 = vadd.f32 0.0, %v444
    %v446 = vpop.f32.mrb[0].mxu0
    %447 = vdwg.mxu0
    %v448 = vadd.f32 %v375, %v445
    %v449 = vxor.u32 %v448, 2147483648
    %v450 = vmul.f32 %v449, 1.442695
    %v451 = vpow.pop %v450
    %v452 = vadd.f32 %v451, 1.0
    %v453 = vrcp.pop %v452
    %v454 = vmul.f32 1.0, %v453
    %v455 = vtanh.pop %v448
    %v456 = vmul.f32 %v454, %v363
    %458 = vrot.lane.b32.xlu0 %v455, 64
    %v459 = vpop.permute.xlu0 %458
    %v461 = vmul.f32 %v454, %v459
    %463 = vrot.lane.b32.xlu0 %v461, 32
    %v464 = vpop.permute.xlu0 %463
    %v466 = vadd.f32 %v456, %v464
    %v467 = vtanh.pop %v466
    %469 = vrot.lane.b32.xlu0 %v467, 64
    %v470 = vpop.permute.xlu0 %469
    %v472 = vmul.f32 %v454, %v470
    %474 = vrot.lane.b32.xlu0 %v472, 32
    %v475 = vpop.permute.xlu0 %474
    %477 = vst.msk [vmem:[#allocation3 + $0x2] sm:$0x1] %vm270, %v475
    %v478 = vld [vmem:[#allocation2 + $0x3] sm:$0x1]
    %v479 = vsel %vm167, %v475, 0
    %481 = vmatprep.subr.mxu0 0.0
    %482 = vmatpush1.msra.mxu0 %v162
    %483 = vmatprep.subr.mxu0 0.0
    %484 = vmatpush1.msra.mxu0 %v163
    %485 = vmatprep.subr.mxu0 0.0
    %486 = vmatpush1.msra.mxu0 %v164
    %487 = vmatprep.subr.mxu0 0.0
    %488 = vmatpush1.msra.mxu0 %v165
    %489 = vmatprep.subr.mxu0 0.0
    %490 = vmatpush1.msra.mxu0 0.0
    %491 = vmatprep.subr.mxu0 0.0
    %492 = vmatpush1.msra.mxu0 0.0
    %493 = vmatprep.subr.mxu0 0.0
    %494 = vmatpush1.msra.mxu0 0.0
    %495 = vmatprep.subr.mxu0 0.0
    %496 = vmatpush1.msra.mxu0 0.0
    %497 = vmatprep.subr.mxu0 0.0
    %498 = vmatpush1.msra.mxu0 0.0
    %499 = vmatprep.subr.mxu0 0.0
    %500 = vmatpush1.msra.mxu0 0.0
    %501 = vmatprep.subr.mxu0 0.0
    %502 = vmatpush1.msra.mxu0 0.0
    %503 = vmatprep.subr.mxu0 0.0
    %504 = vmatpush1.msra.mxu0 0.0
    %505 = vmatprep.subr.mxu0 0.0
    %506 = vmatpush1.msra.mxu0 0.0
    %507 = vmatprep.subr.mxu0 0.0
    %508 = vmatpush1.msra.mxu0 0.0
    %509 = vmatprep.subr.mxu0 0.0
    %510 = vmatpush1.msra.mxu0 0.0
    %511 = vmatprep.subr.mxu0 0.0
    %512 = vmatpush1.msra.mxu0 0.0
    %513 = vmatprep.subr.mxu0 0.0
    %514 = vmatpush1.msra.mxu0 0.0
    %515 = vmatprep.subr.mxu0 0.0
    %516 = vmatpush1.msra.mxu0 0.0
    %517 = vmatprep.subr.mxu0 0.0
    %518 = vmatpush1.msra.mxu0 0.0
    %519 = vmatprep.subr.mxu0 0.0
    %520 = vmatpush1.msra.mxu0 0.0
    %521 = vmatprep.subr.mxu0 0.0
    %522 = vmatpush1.msra.mxu0 0.0
    %523 = vmatprep.subr.mxu0 0.0
    %524 = vmatpush1.msra.mxu0 0.0
    %525 = vmatprep.subr.mxu0 0.0
    %526 = vmatpush1.msra.mxu0 0.0
    %527 = vmatprep.subr.mxu0 0.0
    %528 = vmatpush1.msra.mxu0 0.0
    %529 = vmatprep.subr.mxu0 0.0
    %530 = vmatpush1.msra.mxu0 0.0
    %531 = vmatprep.subr.mxu0 0.0
    %532 = vmatpush1.msra.mxu0 0.0
    %533 = vmatprep.subr.mxu0 0.0
    %534 = vmatpush1.msra.mxu0 0.0
    %535 = vmatprep.subr.mxu0 0.0
    %536 = vmatpush1.msra.mxu0 0.0
    %537 = vmatprep.subr.mxu0 0.0
    %538 = vmatpush1.msra.mxu0 0.0
    %539 = vmatprep.subr.mxu0 0.0
    %540 = vmatpush1.msra.mxu0 0.0
    %541 = vmatprep.subr.mxu0 0.0
    %542 = vmatpush1.msra.mxu0 0.0
    %543 = vmatprep.subr.mxu0 0.0
    %544 = vmatpush1.msra.mxu0 0.0
    %545 = vmatprep.mubr.f32.mxu0 0.0
    %546 = vmatmul.mubr.f32.gmra.mrb[0].mxu0 %v479
    %v547 = vpop.f32.mrb[0].mxu0
    %v548 = vadd.f32 0.0, %v547
    %v549 = vpop.f32.mrb[0].mxu0
    %550 = vdwg.mxu0
    %v551 = vadd.f32 %v478, %v548
    %v552 = vxor.u32 %v551, 2147483648
    %v553 = vmul.f32 %v552, 1.442695
    %v554 = vpow.pop %v553
    %v555 = vadd.f32 %v554, 1.0
    %v556 = vrcp.pop %v555
    %v557 = vmul.f32 1.0, %v556
    %v558 = vtanh.pop %v551
    %v559 = vmul.f32 %v557, %v466
    %561 = vrot.lane.b32.xlu0 %v558, 64
    %v562 = vpop.permute.xlu0 %561
    %v564 = vmul.f32 %v557, %v562
    %566 = vrot.lane.b32.xlu0 %v564, 32
    %v567 = vpop.permute.xlu0 %566
    %v569 = vadd.f32 %v559, %v567
    %v570 = vtanh.pop %v569
    %572 = vrot.lane.b32.xlu0 %v570, 64
    %v573 = vpop.permute.xlu0 %572
    %v575 = vmul.f32 %v557, %v573
    %577 = vrot.lane.b32.xlu0 %v575, 32
    %v578 = vpop.permute.xlu0 %577
    %580 = vst.msk [vmem:[#allocation3 + $0x3] sm:$0x1] %vm270, %v578
    %v581 = vld [vmem:[#allocation2 + $0x4] sm:$0x1]
    %v582 = vsel %vm167, %v578, 0
    %584 = vmatprep.subr.mxu0 0.0
    %585 = vmatpush1.msra.mxu0 %v162
    %586 = vmatprep.subr.mxu0 0.0
    %587 = vmatpush1.msra.mxu0 %v163
    %588 = vmatprep.subr.mxu0 0.0
    %589 = vmatpush1.msra.mxu0 %v164
    %590 = vmatprep.subr.mxu0 0.0
    %591 = vmatpush1.msra.mxu0 %v165
    %592 = vmatprep.subr.mxu0 0.0
    %593 = vmatpush1.msra.mxu0 0.0
    %594 = vmatprep.subr.mxu0 0.0
    %595 = vmatpush1.msra.mxu0 0.0
    %596 = vmatprep.subr.mxu0 0.0
    %597 = vmatpush1.msra.mxu0 0.0
    %598 = vmatprep.subr.mxu0 0.0
    %599 = vmatpush1.msra.mxu0 0.0
    %600 = vmatprep.subr.mxu0 0.0
    %601 = vmatpush1.msra.mxu0 0.0
    %602 = vmatprep.subr.mxu0 0.0
    %603 = vmatpush1.msra.mxu0 0.0
    %604 = vmatprep.subr.mxu0 0.0
    %605 = vmatpush1.msra.mxu0 0.0
    %606 = vmatprep.subr.mxu0 0.0
    %607 = vmatpush1.msra.mxu0 0.0
    %608 = vmatprep.subr.mxu0 0.0
    %609 = vmatpush1.msra.mxu0 0.0
    %610 = vmatprep.subr.mxu0 0.0
    %611 = vmatpush1.msra.mxu0 0.0
    %612 = vmatprep.subr.mxu0 0.0
    %613 = vmatpush1.msra.mxu0 0.0
    %614 = vmatprep.subr.mxu0 0.0
    %615 = vmatpush1.msra.mxu0 0.0
    %616 = vmatprep.subr.mxu0 0.0
    %617 = vmatpush1.msra.mxu0 0.0
    %618 = vmatprep.subr.mxu0 0.0
    %619 = vmatpush1.msra.mxu0 0.0
    %620 = vmatprep.subr.mxu0 0.0
    %621 = vmatpush1.msra.mxu0 0.0
    %622 = vmatprep.subr.mxu0 0.0
    %623 = vmatpush1.msra.mxu0 0.0
    %624 = vmatprep.subr.mxu0 0.0
    %625 = vmatpush1.msra.mxu0 0.0
    %626 = vmatprep.subr.mxu0 0.0
    %627 = vmatpush1.msra.mxu0 0.0
    %628 = vmatprep.subr.mxu0 0.0
    %629 = vmatpush1.msra.mxu0 0.0
    %630 = vmatprep.subr.mxu0 0.0
    %631 = vmatpush1.msra.mxu0 0.0
    %632 = vmatprep.subr.mxu0 0.0
    %633 = vmatpush1.msra.mxu0 0.0
    %634 = vmatprep.subr.mxu0 0.0
    %635 = vmatpush1.msra.mxu0 0.0
    %636 = vmatprep.subr.mxu0 0.0
    %637 = vmatpush1.msra.mxu0 0.0
    %638 = vmatprep.subr.mxu0 0.0
    %639 = vmatpush1.msra.mxu0 0.0
    %640 = vmatprep.subr.mxu0 0.0
    %641 = vmatpush1.msra.mxu0 0.0
    %642 = vmatprep.subr.mxu0 0.0
    %643 = vmatpush1.msra.mxu0 0.0
    %644 = vmatprep.subr.mxu0 0.0
    %645 = vmatpush1.msra.mxu0 0.0
    %646 = vmatprep.subr.mxu0 0.0
    %647 = vmatpush1.msra.mxu0 0.0
    %648 = vmatprep.mubr.f32.mxu0 0.0
    %649 = vmatmul.mubr.f32.gmra.mrb[0].mxu0 %v582
    %v650 = vpop.f32.mrb[0].mxu0
    %v651 = vadd.f32 0.0, %v650
    %v652 = vpop.f32.mrb[0].mxu0
    %653 = vdwg.mxu0
    %v654 = vadd.f32 %v581, %v651
    %v655 = vxor.u32 %v654, 2147483648
    %v656 = vmul.f32 %v655, 1.442695
    %v657 = vpow.pop %v656
    %v658 = vadd.f32 %v657, 1.0
    %v659 = vrcp.pop %v658
    %v660 = vmul.f32 1.0, %v659
    %v661 = vtanh.pop %v654
    %v662 = vmul.f32 %v660, %v569
    %664 = vrot.lane.b32.xlu0 %v661, 64
    %v665 = vpop.permute.xlu0 %664
    %v667 = vmul.f32 %v660, %v665
    %669 = vrot.lane.b32.xlu0 %v667, 32
    %v670 = vpop.permute.xlu0 %669
    %v672 = vadd.f32 %v662, %v670
    %v673 = vtanh.pop %v672
    %675 = vrot.lane.b32.xlu0 %v673, 64
    %v676 = vpop.permute.xlu0 %675
    %v678 = vmul.f32 %v660, %v676
    %680 = vrot.lane.b32.xlu0 %v678, 32
    %v681 = vpop.permute.xlu0 %680
    %683 = vst.msk [vmem:[#allocation3 + $0x4] sm:$0x1] %vm270, %v681
    %v684 = vld [vmem:[#allocation2 + $0x5] sm:$0x1]
    %v685 = vsel %vm167, %v681, 0
    %687 = vmatprep.subr.mxu0 0.0
    %688 = vmatpush1.msra.mxu0 %v162
    %689 = vmatprep.subr.mxu0 0.0
    %690 = vmatpush1.msra.mxu0 %v163
    %691 = vmatprep.subr.mxu0 0.0
    %692 = vmatpush1.msra.mxu0 %v164
    %693 = vmatprep.subr.mxu0 0.0
    %694 = vmatpush1.msra.mxu0 %v165
    %695 = vmatprep.subr.mxu0 0.0
    %696 = vmatpush1.msra.mxu0 0.0
    %697 = vmatprep.subr.mxu0 0.0
    %698 = vmatpush1.msra.mxu0 0.0
    %699 = vmatprep.subr.mxu0 0.0
    %700 = vmatpush1.msra.mxu0 0.0
    %701 = vmatprep.subr.mxu0 0.0
    %702 = vmatpush1.msra.mxu0 0.0
    %703 = vmatprep.subr.mxu0 0.0
    %704 = vmatpush1.msra.mxu0 0.0
    %705 = vmatprep.subr.mxu0 0.0
    %706 = vmatpush1.msra.mxu0 0.0
    %707 = vmatprep.subr.mxu0 0.0
    %708 = vmatpush1.msra.mxu0 0.0
    %709 = vmatprep.subr.mxu0 0.0
    %710 = vmatpush1.msra.mxu0 0.0
    %711 = vmatprep.subr.mxu0 0.0
    %712 = vmatpush1.msra.mxu0 0.0
    %713 = vmatprep.subr.mxu0 0.0
    %714 = vmatpush1.msra.mxu0 0.0
    %715 = vmatprep.subr.mxu0 0.0
    %716 = vmatpush1.msra.mxu0 0.0
    %717 = vmatprep.subr.mxu0 0.0
    %718 = vmatpush1.msra.mxu0 0.0
    %719 = vmatprep.subr.mxu0 0.0
    %720 = vmatpush1.msra.mxu0 0.0
    %721 = vmatprep.subr.mxu0 0.0
    %722 = vmatpush1.msra.mxu0 0.0
    %723 = vmatprep.subr.mxu0 0.0
    %724 = vmatpush1.msra.mxu0 0.0
    %725 = vmatprep.subr.mxu0 0.0
    %726 = vmatpush1.msra.mxu0 0.0
    %727 = vmatprep.subr.mxu0 0.0
    %728 = vmatpush1.msra.mxu0 0.0
    %729 = vmatprep.subr.mxu0 0.0
    %730 = vmatpush1.msra.mxu0 0.0
    %731 = vmatprep.subr.mxu0 0.0
    %732 = vmatpush1.msra.mxu0 0.0
    %733 = vmatprep.subr.mxu0 0.0
    %734 = vmatpush1.msra.mxu0 0.0
    %735 = vmatprep.subr.mxu0 0.0
    %736 = vmatpush1.msra.mxu0 0.0
    %737 = vmatprep.subr.mxu0 0.0
    %738 = vmatpush1.msra.mxu0 0.0
    %739 = vmatprep.subr.mxu0 0.0
    %740 = vmatpush1.msra.mxu0 0.0
    %741 = vmatprep.subr.mxu0 0.0
    %742 = vmatpush1.msra.mxu0 0.0
    %743 = vmatprep.subr.mxu0 0.0
    %744 = vmatpush1.msra.mxu0 0.0
    %745 = vmatprep.subr.mxu0 0.0
    %746 = vmatpush1.msra.mxu0 0.0
    %747 = vmatprep.subr.mxu0 0.0
    %748 = vmatpush1.msra.mxu0 0.0
    %749 = vmatprep.subr.mxu0 0.0
    %750 = vmatpush1.msra.mxu0 0.0
    %751 = vmatprep.mubr.f32.mxu0 0.0
    %752 = vmatmul.mubr.f32.gmra.mrb[0].mxu0 %v685
    %v753 = vpop.f32.mrb[0].mxu0
    %v754 = vadd.f32 0.0, %v753
    %v755 = vpop.f32.mrb[0].mxu0
    %756 = vdwg.mxu0
    %v757 = vadd.f32 %v684, %v754
    %v758 = vxor.u32 %v757, 2147483648
    %v759 = vmul.f32 %v758, 1.442695
    %v760 = vpow.pop %v759
    %v761 = vadd.f32 %v760, 1.0
    %v762 = vrcp.pop %v761
    %v763 = vmul.f32 1.0, %v762
    %v764 = vtanh.pop %v757
    %v765 = vmul.f32 %v763, %v672
    %767 = vrot.lane.b32.xlu0 %v764, 64
    %v768 = vpop.permute.xlu0 %767
    %v770 = vmul.f32 %v763, %v768
    %772 = vrot.lane.b32.xlu0 %v770, 32
    %v773 = vpop.permute.xlu0 %772
    %v775 = vadd.f32 %v765, %v773
    %v776 = vtanh.pop %v775
    %778 = vrot.lane.b32.xlu0 %v776, 64
    %v779 = vpop.permute.xlu0 %778
    %v781 = vmul.f32 %v763, %v779
    %783 = vrot.lane.b32.xlu0 %v781, 32
    %v784 = vpop.permute.xlu0 %783
    %786 = vst.msk [vmem:[#allocation3 + $0x5] sm:$0x1] %vm270, %v784
    %v787 = vld [vmem:[#allocation2 + $0x6] sm:$0x1]
    %v788 = vsel %vm167, %v784, 0
    %790 = vmatprep.subr.mxu0 0.0
    %791 = vmatpush1.msra.mxu0 %v162
    %792 = vmatprep.subr.mxu0 0.0
    %793 = vmatpush1.msra.mxu0 %v163
    %794 = vmatprep.subr.mxu0 0.0
    %795 = vmatpush1.msra.mxu0 %v164
    %796 = vmatprep.subr.mxu0 0.0
    %797 = vmatpush1.msra.mxu0 %v165
    %798 = vmatprep.subr.mxu0 0.0
    %799 = vmatpush1.msra.mxu0 0.0
    %800 = vmatprep.subr.mxu0 0.0
    %801 = vmatpush1.msra.mxu0 0.0
    %802 = vmatprep.subr.mxu0 0.0
    %803 = vmatpush1.msra.mxu0 0.0
    %804 = vmatprep.subr.mxu0 0.0
    %805 = vmatpush1.msra.mxu0 0.0
    %806 = vmatprep.subr.mxu0 0.0
    %807 = vmatpush1.msra.mxu0 0.0
    %808 = vmatprep.subr.mxu0 0.0
    %809 = vmatpush1.msra.mxu0 0.0
    %810 = vmatprep.subr.mxu0 0.0
    %811 = vmatpush1.msra.mxu0 0.0
    %812 = vmatprep.subr.mxu0 0.0
    %813 = vmatpush1.msra.mxu0 0.0
    %814 = vmatprep.subr.mxu0 0.0
    %815 = vmatpush1.msra.mxu0 0.0
    %816 = vmatprep.subr.mxu0 0.0
    %817 = vmatpush1.msra.mxu0 0.0
    %818 = vmatprep.subr.mxu0 0.0
    %819 = vmatpush1.msra.mxu0 0.0
    %820 = vmatprep.subr.mxu0 0.0
    %821 = vmatpush1.msra.mxu0 0.0
    %822 = vmatprep.subr.mxu0 0.0
    %823 = vmatpush1.msra.mxu0 0.0
    %824 = vmatprep.subr.mxu0 0.0
    %825 = vmatpush1.msra.mxu0 0.0
    %826 = vmatprep.subr.mxu0 0.0
    %827 = vmatpush1.msra.mxu0 0.0
    %828 = vmatprep.subr.mxu0 0.0
    %829 = vmatpush1.msra.mxu0 0.0
    %830 = vmatprep.subr.mxu0 0.0
    %831 = vmatpush1.msra.mxu0 0.0
    %832 = vmatprep.subr.mxu0 0.0
    %833 = vmatpush1.msra.mxu0 0.0
    %834 = vmatprep.subr.mxu0 0.0
    %835 = vmatpush1.msra.mxu0 0.0
    %836 = vmatprep.subr.mxu0 0.0
    %837 = vmatpush1.msra.mxu0 0.0
    %838 = vmatprep.subr.mxu0 0.0
    %839 = vmatpush1.msra.mxu0 0.0
    %840 = vmatprep.subr.mxu0 0.0
    %841 = vmatpush1.msra.mxu0 0.0
    %842 = vmatprep.subr.mxu0 0.0
    %843 = vmatpush1.msra.mxu0 0.0
    %844 = vmatprep.subr.mxu0 0.0
    %845 = vmatpush1.msra.mxu0 0.0
    %846 = vmatprep.subr.mxu0 0.0
    %847 = vmatpush1.msra.mxu0 0.0
    %848 = vmatprep.subr.mxu0 0.0
    %849 = vmatpush1.msra.mxu0 0.0
    %850 = vmatprep.subr.mxu0 0.0
    %851 = vmatpush1.msra.mxu0 0.0
    %852 = vmatprep.subr.mxu0 0.0
    %853 = vmatpush1.msra.mxu0 0.0
    %854 = vmatprep.mubr.f32.mxu0 0.0
    %855 = vmatmul.mubr.f32.gmra.mrb[0].mxu0 %v788
    %v856 = vpop.f32.mrb[0].mxu0
    %v857 = vadd.f32 0.0, %v856
    %v858 = vpop.f32.mrb[0].mxu0
    %859 = vdwg.mxu0
    %v860 = vadd.f32 %v787, %v857
    %v861 = vxor.u32 %v860, 2147483648
    %v862 = vmul.f32 %v861, 1.442695
    %v863 = vpow.pop %v862
    %v864 = vadd.f32 %v863, 1.0
    %v865 = vrcp.pop %v864
    %v866 = vmul.f32 1.0, %v865
    %v867 = vtanh.pop %v860
    %v868 = vmul.f32 %v866, %v775
    %870 = vrot.lane.b32.xlu0 %v867, 64
    %v871 = vpop.permute.xlu0 %870
    %v873 = vmul.f32 %v866, %v871
    %875 = vrot.lane.b32.xlu0 %v873, 32
    %v876 = vpop.permute.xlu0 %875
    %v878 = vadd.f32 %v868, %v876
    %v879 = vtanh.pop %v878
    %881 = vrot.lane.b32.xlu0 %v879, 64
    %v882 = vpop.permute.xlu0 %881
    %v884 = vmul.f32 %v866, %v882
    %886 = vrot.lane.b32.xlu0 %v884, 32
    %v887 = vpop.permute.xlu0 %886
    %889 = vst.msk [vmem:[#allocation3 + $0x6] sm:$0x1] %vm270, %v887
    %v890 = vld [vmem:[#allocation2 + $0x7] sm:$0x1]
    %v891 = vsel %vm167, %v887, 0
    %893 = vmatprep.subr.mxu0 0.0
    %894 = vmatpush1.msra.mxu0 %v162
    %895 = vmatprep.subr.mxu0 0.0
    %896 = vmatpush1.msra.mxu0 %v163
    %897 = vmatprep.subr.mxu0 0.0
    %898 = vmatpush1.msra.mxu0 %v164
    %899 = vmatprep.subr.mxu0 0.0
    %900 = vmatpush1.msra.mxu0 %v165
    %901 = vmatprep.subr.mxu0 0.0
    %902 = vmatpush1.msra.mxu0 0.0
    %903 = vmatprep.subr.mxu0 0.0
    %904 = vmatpush1.msra.mxu0 0.0
    %905 = vmatprep.subr.mxu0 0.0
    %906 = vmatpush1.msra.mxu0 0.0
    %907 = vmatprep.subr.mxu0 0.0
    %908 = vmatpush1.msra.mxu0 0.0
    %909 = vmatprep.subr.mxu0 0.0
    %910 = vmatpush1.msra.mxu0 0.0
    %911 = vmatprep.subr.mxu0 0.0
    %912 = vmatpush1.msra.mxu0 0.0
    %913 = vmatprep.subr.mxu0 0.0
    %914 = vmatpush1.msra.mxu0 0.0
    %915 = vmatprep.subr.mxu0 0.0
    %916 = vmatpush1.msra.mxu0 0.0
    %917 = vmatprep.subr.mxu0 0.0
    %918 = vmatpush1.msra.mxu0 0.0
    %919 = vmatprep.subr.mxu0 0.0
    %920 = vmatpush1.msra.mxu0 0.0
    %921 = vmatprep.subr.mxu0 0.0
    %922 = vmatpush1.msra.mxu0 0.0
    %923 = vmatprep.subr.mxu0 0.0
    %924 = vmatpush1.msra.mxu0 0.0
    %925 = vmatprep.subr.mxu0 0.0
    %926 = vmatpush1.msra.mxu0 0.0
    %927 = vmatprep.subr.mxu0 0.0
    %928 = vmatpush1.msra.mxu0 0.0
    %929 = vmatprep.subr.mxu0 0.0
    %930 = vmatpush1.msra.mxu0 0.0
    %931 = vmatprep.subr.mxu0 0.0
    %932 = vmatpush1.msra.mxu0 0.0
    %933 = vmatprep.subr.mxu0 0.0
    %934 = vmatpush1.msra.mxu0 0.0
    %935 = vmatprep.subr.mxu0 0.0
    %936 = vmatpush1.msra.mxu0 0.0
    %937 = vmatprep.subr.mxu0 0.0
    %938 = vmatpush1.msra.mxu0 0.0
    %939 = vmatprep.subr.mxu0 0.0
    %940 = vmatpush1.msra.mxu0 0.0
    %941 = vmatprep.subr.mxu0 0.0
    %942 = vmatpush1.msra.mxu0 0.0
    %943 = vmatprep.subr.mxu0 0.0
    %944 = vmatpush1.msra.mxu0 0.0
    %945 = vmatprep.subr.mxu0 0.0
    %946 = vmatpush1.msra.mxu0 0.0
    %947 = vmatprep.subr.mxu0 0.0
    %948 = vmatpush1.msra.mxu0 0.0
    %949 = vmatprep.subr.mxu0 0.0
    %950 = vmatpush1.msra.mxu0 0.0
    %951 = vmatprep.subr.mxu0 0.0
    %952 = vmatpush1.msra.mxu0 0.0
    %953 = vmatprep.subr.mxu0 0.0
    %954 = vmatpush1.msra.mxu0 0.0
    %955 = vmatprep.subr.mxu0 0.0
    %956 = vmatpush1.msra.mxu0 0.0
    %957 = vmatprep.mubr.f32.mxu0 0.0
    %958 = vmatmul.mubr.f32.gmra.mrb[0].mxu0 %v891
    %v959 = vpop.f32.mrb[0].mxu0
    %v960 = vadd.f32 0.0, %v959
    %v961 = vpop.f32.mrb[0].mxu0
    %962 = vdwg.mxu0
    %v963 = vadd.f32 %v890, %v960
    %v964 = vxor.u32 %v963, 2147483648
    %v965 = vmul.f32 %v964, 1.442695
    %v966 = vpow.pop %v965
    %v967 = vadd.f32 %v966, 1.0
    %v968 = vrcp.pop %v967
    %v969 = vmul.f32 1.0, %v968
    %v970 = vtanh.pop %v963
    %v971 = vmul.f32 %v969, %v878
    %973 = vrot.lane.b32.xlu0 %v970, 64
    %v974 = vpop.permute.xlu0 %973
    %v976 = vmul.f32 %v969, %v974
    %978 = vrot.lane.b32.xlu0 %v976, 32
    %v979 = vpop.permute.xlu0 %978
    %v981 = vadd.f32 %v971, %v979
    %v982 = vtanh.pop %v981
    %984 = vrot.lane.b32.xlu0 %v982, 64
    %v985 = vpop.permute.xlu0 %984
    %v987 = vmul.f32 %v969, %v985
    %989 = vrot.lane.b32.xlu0 %v987, 32
    %v990 = vpop.permute.xlu0 %989
    %992 = vst.msk [vmem:[#allocation3 + $0x7] sm:$0x1] %vm270, %v990
    %v993 = vld [vmem:[#allocation3] sm:$0xff]
    %v994 = vld [vmem:[#allocation10] sm:$0xff]
    %v995 = vld [vmem:[#allocation10 + $0x8] sm:$0xff]
    %v996 = vld [vmem:[#allocation10 + $0x10] sm:$0xff]
    %v997 = vld [vmem:[#allocation10 + $0x18] sm:$0xff]
    %v998 = vld [vmem:[%s5] sm:$0x1]
    %v1000 = vlaneseq
    %v1001 = vshrl.u32 %v1000, 7
    %v1002 = vsub.s32 0, %v1001
    %v1003 = vrot.slane %v998, %v1002
    %v1006 = vsel %vm167, %v993, 0
    %1008 = vmatprep.subr.mxu0 0.0
    %1009 = vmatpush1.msra.mxu0 %v994
    %1010 = vmatprep.subr.mxu0 0.0
    %1011 = vmatpush1.msra.mxu0 %v995
    %1012 = vmatprep.subr.mxu0 0.0
    %1013 = vmatpush1.msra.mxu0 %v996
    %1014 = vmatprep.subr.mxu0 0.0
    %1015 = vmatpush1.msra.mxu0 %v997
    %1016 = vmatprep.subr.mxu0 0.0
    %1017 = vmatpush1.msra.mxu0 0.0
    %1018 = vmatprep.subr.mxu0 0.0
    %1019 = vmatpush1.msra.mxu0 0.0
    %1020 = vmatprep.subr.mxu0 0.0
    %1021 = vmatpush1.msra.mxu0 0.0
    %1022 = vmatprep.subr.mxu0 0.0
    %1023 = vmatpush1.msra.mxu0 0.0
    %1024 = vmatprep.subr.mxu0 0.0
    %1025 = vmatpush1.msra.mxu0 0.0
    %1026 = vmatprep.subr.mxu0 0.0
    %1027 = vmatpush1.msra.mxu0 0.0
    %1028 = vmatprep.subr.mxu0 0.0
    %1029 = vmatpush1.msra.mxu0 0.0
    %1030 = vmatprep.subr.mxu0 0.0
    %1031 = vmatpush1.msra.mxu0 0.0
    %1032 = vmatprep.subr.mxu0 0.0
    %1033 = vmatpush1.msra.mxu0 0.0
    %1034 = vmatprep.subr.mxu0 0.0
    %1035 = vmatpush1.msra.mxu0 0.0
    %1036 = vmatprep.subr.mxu0 0.0
    %1037 = vmatpush1.msra.mxu0 0.0
    %1038 = vmatprep.subr.mxu0 0.0
    %1039 = vmatpush1.msra.mxu0 0.0
    %1040 = vmatprep.subr.mxu0 0.0
    %1041 = vmatpush1.msra.mxu0 0.0
    %1042 = vmatprep.subr.mxu0 0.0
    %1043 = vmatpush1.msra.mxu0 0.0
    %1044 = vmatprep.subr.mxu0 0.0
    %1045 = vmatpush1.msra.mxu0 0.0
    %1046 = vmatprep.subr.mxu0 0.0
    %1047 = vmatpush1.msra.mxu0 0.0
    %1048 = vmatprep.subr.mxu0 0.0
    %1049 = vmatpush1.msra.mxu0 0.0
    %1050 = vmatprep.subr.mxu0 0.0
    %1051 = vmatpush1.msra.mxu0 0.0
    %1052 = vmatprep.subr.mxu0 0.0
    %1053 = vmatpush1.msra.mxu0 0.0
    %1054 = vmatprep.subr.mxu0 0.0
    %1055 = vmatpush1.msra.mxu0 0.0
    %1056 = vmatprep.subr.mxu0 0.0
    %1057 = vmatpush1.msra.mxu0 0.0
    %1058 = vmatprep.subr.mxu0 0.0
    %1059 = vmatpush1.msra.mxu0 0.0
    %1060 = vmatprep.subr.mxu0 0.0
    %1061 = vmatpush1.msra.mxu0 0.0
    %1062 = vmatprep.subr.mxu0 0.0
    %1063 = vmatpush1.msra.mxu0 0.0
    %1064 = vmatprep.subr.mxu0 0.0
    %1065 = vmatpush1.msra.mxu0 0.0
    %1066 = vmatprep.subr.mxu0 0.0
    %1067 = vmatpush1.msra.mxu0 0.0
    %1068 = vmatprep.subr.mxu0 0.0
    %1069 = vmatpush1.msra.mxu0 0.0
    %1070 = vmatprep.subr.mxu0 0.0
    %1071 = vmatpush1.msra.mxu0 0.0
    %1072 = vmatprep.mubr.f32.mxu0 0.0
    %1073 = vmatmul.mubr.f32.gmra.mrb[0].mxu0 %v1006
    %v1074 = vpop.f32.mrb[0].mxu0
    %v1075 = vadd.f32 %v1003, %v1074
    %v1076 = vpop.f32.mrb[0].mxu0
    %1077 = vdwg.mxu0
    %1078 = vmax.xlane.f32.xlu0 %v1075
    %v1079 = vpop.xlane.xlu0 %1078
    %v1080 = vsub.f32 %v1075, %v1079
    %v1081 = vmul.f32 %v1080, 1.442695
    %v1082 = vpow.pop %v1081
    %1083 = vadd.xlane.f32.xlu0 %v1082
    %v1084 = vpop.xlane.xlu0 %1083
    %v1085 = vlog2.pop %v1084
    %v1086 = vmul.f32 %v1085, 0.6931472
    %v1087 = vsub.f32 %v1080, %v1086
    %1088 = vst [vmem:[#allocation12] sm:$0xff] %v1087
    // Predicated region
    $region42: #{tpu_custom_call.1} parent=1 // pred_check
      _
    $region43: #{tpu_custom_call.1} parent=1 // pred_check_branch
      %1090 = sbr.rel (0) target = $region45
    $region44: #{tpu_custom_call.1} parent=1 // pred_region
      %s1092 = ssub.s32 128, 128
      %1093 = vsyncadd [#allocation6], %s1092
      %s1095 = sshll.u32 [#allocation12], 4
      %s1096 = int_to_ptr.vmem [resolvable:$true] %s1095
      %1098 = dma.vmem_to_hbm [thread:$0]  %s1096, 128, %s6, [#allocation6]
    $region45: #{tpu_custom_call.1} parent=1 // pred_fallthru
      _
    // Predicated region
    $region46: #{tpu_custom_call.1} parent=1 // pred_check
      _
    $region47: #{tpu_custom_call.1} parent=1 // pred_check_branch
      %1100 = sbr.rel (0) target = $region49
    $region48: #{tpu_custom_call.1} parent=1 // pred_region
      %1101 = dma.done [#allocation6], 128
    $region49: #{tpu_custom_call.1} parent=1 // pred_fallthru
      _
    %1102 = vsyncpa [#allocation5], 1
    %1103 = vsyncpa [#allocation8], 1
    %1104 = vsyncpa [#allocation11], 1
    %1105 = vsyncpa [#allocation6], 1

</llo_original>
